<compile_context>
chip_gen: v7x
topology: tpu7x:2x2x1
jax: 0.10.0
libtpu: 0.0.40
codegen_flags: <defaults>
</compile_context>

<pallas_src>
import functools

import jax
import jax.numpy as jnp
from jax import lax
from jax.experimental import pallas as pl
from jax.experimental.pallas import tpu as pltpu


# ---------------------------------------------------------------------------
# Kernel: one batch tile (tb rows of each view) -> per-tile loss sums.
# ---------------------------------------------------------------------------
def _byol_tile_kernel(x1_ref, x2_ref, we_ref, be_ref, wzq_ref, bzq_ref, out_ref,
                      *, zpad, batch):
    """out_ref is an (8, 128) block: [0, 0] = sum of view-1 per-sample losses in
    this tile, [1, 0] = sum of view-2 losses, everything else 0.  Writing one full
    (8, 128) block keeps the store lane-dense (unmasked vst)."""
    tb = x1_ref.shape[0]
    we = we_ref[...]                 # (d_in, hid)    bf16, resident
    be = be_ref[...]                 # (1, hid)       f32
    wzq = wzq_ref[...]               # (hid, 2*zpad)  bf16, resident (proj | proj@pred)
    bzq = bzq_ref[...]               # (1, 2*zpad)    f32

    def per_view_loss(x_ref):
        # Cast to bf16 inside the kernel: x streams from HBM as one f32 read
        # instead of a wrapper-side read-f32 / write-bf16 / read-bf16 chain.
        x = x_ref[...].astype(jnp.bfloat16)                          # (tb, d_in)
        h = jnp.dot(x, we, preferred_element_type=jnp.float32) + be  # (tb, hid) f32
        h = jnp.maximum(h, 0.0)                                      # shared encoder ReLU
        zq = jnp.dot(h.astype(jnp.bfloat16), wzq,
                     preferred_element_type=jnp.float32) + bzq       # (tb, 2*zpad) f32
        z = zq[:, :zpad]   # projector(encoder(x))               (128-lane aligned view)
        q = zq[:, zpad:]   # predictor(projector(encoder(x)))    (128-lane aligned view)

        # loss = 2 - 2 * cos(normalize(q), normalize(z)); torch F.normalize eps clamp.
        qq = jnp.sum(q * q, axis=-1, keepdims=True)                  # (tb, 1)
        zz = jnp.sum(z * z, axis=-1, keepdims=True)
        qz = jnp.sum(q * z, axis=-1, keepdims=True)
        eps = 1e-12
        inv_qn = jnp.minimum(lax.rsqrt(qq), 1.0 / eps)   # 1/max(||q||, eps) on the EUP
        inv_zn = jnp.minimum(lax.rsqrt(zz), 1.0 / eps)
        return 2.0 - 2.0 * (qz * inv_qn * inv_zn)                    # (tb, 1) f32

    # Mask rows past the true batch (partial boundary block contains garbage that
    # may be NaN/Inf) before reducing -- no jnp.pad of the input stream needed.
    row = pl.program_id(0) * tb + lax.broadcasted_iota(jnp.int32, (tb, 1), 0)
    valid = row < batch
    l1 = jnp.where(valid, per_view_loss(x1_ref), 0.0)                # (tb, 1)
    l2 = jnp.where(valid, per_view_loss(x2_ref), 0.0)
    s1 = jnp.sum(l1, axis=0, keepdims=True)                          # (1, 1)
    s2 = jnp.sum(l2, axis=0, keepdims=True)

    r = lax.broadcasted_iota(jnp.int32, (8, 128), 0)
    c = lax.broadcasted_iota(jnp.int32, (8, 128), 1)
    out_ref[...] = jnp.where((r == 0) & (c == 0), jnp.broadcast_to(s1, (8, 128)),
                   jnp.where((r == 1) & (c == 0), jnp.broadcast_to(s2, (8, 128)),
                             0.0))


# ---------------------------------------------------------------------------
# Parameter preparation: bf16 matmul weights, f32 biases, fused + lane-aligned.
# ---------------------------------------------------------------------------
def _fuse_params(params, lane_align=128):
    """Fuse projector/predictor into one (HID, 2*zpad) matmul with each half padded
    to a multiple of 128 output columns (padded columns are exact zeros)."""
    we, be, wp, bp, wq, bq = params
    _, zdim = wp.shape
    zpad = ((zdim + lane_align - 1) // lane_align) * lane_align
    wq_fused = wp @ wq                       # (hid, zdim) f32
    bq_fused = bp @ wq + bq                  # (1, zdim)   f32
    pc = zpad - zdim
    wp_p = jnp.pad(wp, ((0, 0), (0, pc)))
    wqf_p = jnp.pad(wq_fused, ((0, 0), (0, pc)))
    bp_p = jnp.pad(bp, ((0, 0), (0, pc)))
    bqf_p = jnp.pad(bq_fused, ((0, 0), (0, pc)))
    w_zq = jnp.concatenate([wp_p, wqf_p], axis=1).astype(jnp.bfloat16)  # (hid, 2*zpad)
    b_zq = jnp.concatenate([bp_p, bqf_p], axis=1).astype(jnp.float32)   # (1, 2*zpad)
    return we.astype(jnp.bfloat16), be.astype(jnp.float32), w_zq, b_zq, zpad


def _choose_batch_tile(b, d_in):
    """Per-view batch tile: full batch when small, else 128/256/512 rows bounded by
    an ~8 MiB VMEM budget for the double-buffered f32 x stream (2 views)."""
    budget = 8 * 1024 * 1024
    tb = 512
    while tb > 128 and 16 * tb * d_in > budget:   # 2 views * 2 buffers * 4 B
        tb //= 2
    if b <= tb:
        return b, 1                                # single tile == full batch dim
    return tb, pl.cdiv(b, tb)                      # multi-tile: tb multiple of 128


# ---------------------------------------------------------------------------
# Wrapper
# ---------------------------------------------------------------------------
def byol_forward(v1, v2, params, *, single_buffer_weights=True):
    """BYOL forward: sum over views of mean per-sample loss (scalar)."""
    b = v1.shape[0]
    we_b, be_f, w_zq, b_zq, zpad = _fuse_params(params)
    d_in, hid = we_b.shape

    # No concat / pad / dtype copies of the dominant input stream.
    x1 = v1.reshape(b, -1)
    x2 = v2.reshape(b, -1)
    assert x1.shape[1] == d_in

    tb, num_tiles = _choose_batch_tile(b, d_in)

    # Constant-index weight blocks: request single buffering (fallback handled in main).
    wkw = dict(pipeline_mode=pl.Buffered(1)) if single_buffer_weights else {}

    out = pl.pallas_call(
        functools.partial(_byol_tile_kernel, zpad=zpad, batch=b),
        out_shape=jax.ShapeDtypeStruct((8 * num_tiles, 128), jnp.float32),
        grid=(num_tiles,),
        in_specs=[
            # x tiles: one (tb, d_in) f32 block per view per grid step (pipelined).
            pl.BlockSpec((tb, d_in), lambda i: (i, 0)),
            pl.BlockSpec((tb, d_in), lambda i: (i, 0)),
            # weights / biases: same block every step -> resident in VMEM.
            pl.BlockSpec((d_in, hid), lambda i: (0, 0), **wkw),
            pl.BlockSpec((1, hid), lambda i: (0, 0), **wkw),
            pl.BlockSpec((hid, 2 * zpad), lambda i: (0, 0), **wkw),
            pl.BlockSpec((1, 2 * zpad), lambda i: (0, 0), **wkw),
        ],
        # Lane-dense (8, 128) per-tile output block: one unmasked full store.
        out_specs=pl.BlockSpec((8, 128), lambda i: (i, 0)),
        compiler_params=pltpu.CompilerParams(
            dimension_semantics=("parallel",)),
    )(x1, x2, we_b, be_f, w_zq, b_zq)

    sums1 = out[0::8, 0]                       # (num_tiles,) per-tile view-1 loss sums
    sums2 = out[1::8, 0]
    return jnp.sum(sums1) / b + jnp.sum(sums2) / b


# ---------------------------------------------------------------------------
# References
# ---------------------------------------------------------------------------
def _reference_same_precision(v1, v2, params):
    """Pure-JAX reference mirroring the kernel's bf16 / fused / padded math path."""
    we_b, be_f, w_zq, b_zq, zpad = _fuse_params(params)
    b = v1.shape[0]

    def view_loss(v):
        x = v.reshape(b, -1).astype(jnp.bfloat16)
        h = jnp.maximum(jnp.dot(x, we_b, preferred_element_type=jnp.float32) + be_f, 0.0)
        zq = jnp.dot(h.astype(jnp.bfloat16), w_zq,
                     preferred_element_type=jnp.float32) + b_zq
        z, q = zq[:, :zpad], zq[:, zpad:]
        eps = 1e-12
        qn = jnp.maximum(jnp.linalg.norm(q, axis=-1), eps)
        zn = jnp.maximum(jnp.linalg.norm(z, axis=-1), eps)
        per = 2.0 - 2.0 * jnp.sum(q * z, axis=-1) / (qn * zn)
        return jnp.mean(per)

    return view_loss(v1) + view_loss(v2)


def _reference_f32(v1, v2, params):
    """Original-semantics f32 reference (sequential z -> q, per-element divides)."""
    we, be, wp, bp, wq, bq = params

    def view_loss(v):
        x = v.reshape(v.shape[0], -1).astype(jnp.float32)
        h = jnp.maximum(x @ we + be, 0.0)
        z = h @ wp + bp
        q = z @ wq + bq
        eps = 1e-12
        qn = q / jnp.maximum(jnp.linalg.norm(q, axis=-1, keepdims=True), eps)
        zn = z / jnp.maximum(jnp.linalg.norm(z, axis=-1, keepdims=True), eps)
        return jnp.mean(2.0 - 2.0 * jnp.sum(qn * zn, axis=-1))

    return view_loss(v1) + view_loss(v2)


def make_params(key, d_in, hidden, zdim):
    """Deterministic synthetic parameter init (no checkpoint load)."""
    k = jax.random.split(key, 6)
    we = 0.02 * jax.random.normal(k[0], (d_in, hidden), jnp.float32)
    be = 0.02 * jax.random.normal(k[1], (1, hidden), jnp.float32)
    wp = 0.10 * jax.random.normal(k[2], (hidden, zdim), jnp.float32)
    bp = 0.02 * jax.random.normal(k[3], (1, zdim), jnp.float32)
    wq = 0.10 * jax.random.normal(k[4], (zdim, zdim), jnp.float32)
    bq = 0.02 * jax.random.normal(k[5], (1, zdim), jnp.float32)
    return (we, be, wp, bp, wq, bq)


if __name__ == "__main__":
    # Small shapes: batch=2, channels=4, spatial=16x16 -> d_in=1024, hidden=32, z=32.
    B, C, H, W = 2, 4, 16, 16
    D_IN = C * H * W
    HID, Z = 32, 32

    key = jax.random.PRNGKey(0)
    kv1, kv2, kp = jax.random.split(key, 3)
    v1 = jax.random.normal(kv1, (B, C, H, W), jnp.float32)   # NCHW like PyTorch
    v2 = jax.random.normal(kv2, (B, C, H, W), jnp.float32)
    params = make_params(kp, D_IN, HID, Z)

    # Prefer single-buffered resident weights (pl.Buffered(1) on constant blocks);
    # fall back to the default double-buffered path if this build rejects it.
    try:
        fwd = jax.jit(functools.partial(byol_forward, single_buffer_weights=True))
        loss = jax.block_until_ready(fwd(v1, v2, params))
    except Exception:
        fwd = jax.jit(functools.partial(byol_forward, single_buffer_weights=False))
        loss = jax.block_until_ready(fwd(v1, v2, params))

    ref_same = jax.block_until_ready(_reference_same_precision(v1, v2, params))
    ref_f32 = jax.block_until_ready(_reference_f32(v1, v2, params))

    assert jnp.isfinite(loss), "non-finite loss"
    # Tight check vs. a JAX reference computing the same bf16 / fused / padded math.
    assert jnp.allclose(loss, ref_same, rtol=2e-3, atol=2e-3), (loss, ref_same)
    # Loose sanity check vs. the original f32 sequential semantics.
    assert jnp.allclose(loss, ref_f32, rtol=1e-1, atol=1e-1), (loss, ref_f32)
    print("KERNEL_OK")
</pallas_src>

<mosaic_0001>
module attributes {stable_mosaic.version = 11 : i64} {
  func.func @_byol_tile_kernel(%arg0: i32, %arg1: memref<2x1024xf32, #tpu.memory_space<vmem>>, %arg2: memref<2x1024xf32, #tpu.memory_space<vmem>>, %arg3: memref<1024x32xbf16, #tpu.memory_space<vmem>>, %arg4: memref<1x32xf32, #tpu.memory_space<vmem>>, %arg5: memref<32x256xbf16, #tpu.memory_space<vmem>>, %arg6: memref<1x256xf32, #tpu.memory_space<vmem>>, %arg7: memref<8x128xf32, #tpu.memory_space<vmem>>) attributes {dimension_semantics = [#tpu.dimension_semantics<parallel>], iteration_bounds = array<i64: 1>, scalar_prefetch = 0 : i64, scratch_operands = 0 : i64, tpu.core_type = #tpu.core_type<tc>, window_params = [{transform_indices = @transform_0, window_bounds = array<i64: 2, 1024>}, {transform_indices = @transform_1, window_bounds = array<i64: 2, 1024>}, {pipeline_mode = #tpu.pipeline_mode<synchronous>, transform_indices = @transform_2, window_bounds = array<i64: 1024, 32>}, {pipeline_mode = #tpu.pipeline_mode<synchronous>, transform_indices = @transform_3, window_bounds = array<i64: 1, 32>}, {pipeline_mode = #tpu.pipeline_mode<synchronous>, transform_indices = @transform_4, window_bounds = array<i64: 32, 256>}, {pipeline_mode = #tpu.pipeline_mode<synchronous>, transform_indices = @transform_5, window_bounds = array<i64: 1, 256>}, {transform_indices = @transform_6, window_bounds = array<i64: 8, 128>}]} {
    %c0 = arith.constant 0 : index
    %c0_0 = arith.constant 0 : index
    %0 = vector.load %arg3[%c0, %c0_0] : memref<1024x32xbf16, #tpu.memory_space<vmem>>, vector<1024x32xbf16>
    %c0_1 = arith.constant 0 : index
    %c0_2 = arith.constant 0 : index
    %1 = vector.load %arg4[%c0_1, %c0_2] : memref<1x32xf32, #tpu.memory_space<vmem>>, vector<1x32xf32>
    %c0_3 = arith.constant 0 : index
    %c0_4 = arith.constant 0 : index
    %2 = vector.load %arg5[%c0_3, %c0_4] : memref<32x256xbf16, #tpu.memory_space<vmem>>, vector<32x256xbf16>
    %c0_5 = arith.constant 0 : index
    %c0_6 = arith.constant 0 : index
    %3 = vector.load %arg6[%c0_5, %c0_6] : memref<1x256xf32, #tpu.memory_space<vmem>>, vector<1x256xf32>
    %c2_i32 = arith.constant 2 : i32
    %4 = arith.muli %arg0, %c2_i32 : i32
    %5 = tpu.iota {dimensions = array<i32: 0>} : vector<2x1xi32>
    %6 = vector.broadcast %4 : i32 to vector<2x1xi32>
    %7 = arith.addi %6, %5 : vector<2x1xi32>
    %c2_i32_7 = arith.constant 2 : i32
    %8 = vector.broadcast %c2_i32_7 : i32 to vector<2x1xi32>
    %9 = arith.cmpi slt, %7, %8 : vector<2x1xi32>
    %c0_8 = arith.constant 0 : index
    %c0_9 = arith.constant 0 : index
    %10 = vector.load %arg1[%c0_8, %c0_9] : memref<2x1024xf32, #tpu.memory_space<vmem>>, vector<2x1024xf32>
    %11 = arith.truncf %10 : vector<2x1024xf32> to vector<2x1024xbf16>
    %cst = arith.constant dense<0.000000e+00> : vector<2x32xf32>
    %12 = tpu.matmul %11, %0, %cst {dimension_numbers = #tpu.dot_dimension_numbers<[1], [0], [0], [1], [0, 0, 1, 1], [], []>} : vector<2x1024xbf16>, vector<1024x32xbf16>, vector<2x32xf32> -> vector<2x32xf32>
    %13 = vector.broadcast %1 : vector<1x32xf32> to vector<2x32xf32>
    %14 = arith.addf %12, %13 : vector<2x32xf32>
    %cst_10 = arith.constant 0.000000e+00 : f32
    %15 = vector.broadcast %cst_10 : f32 to vector<2x32xf32>
    %16 = arith.maximumf %14, %15 : vector<2x32xf32>
    %17 = arith.truncf %16 : vector<2x32xf32> to vector<2x32xbf16>
    %cst_11 = arith.constant dense<0.000000e+00> : vector<2x256xf32>
    %18 = tpu.matmul %17, %2, %cst_11 {dimension_numbers = #tpu.dot_dimension_numbers<[1], [0], [0], [1], [0, 0, 1, 1], [], []>} : vector<2x32xbf16>, vector<32x256xbf16>, vector<2x256xf32> -> vector<2x256xf32>
    %19 = vector.broadcast %3 : vector<1x256xf32> to vector<2x256xf32>
    %20 = arith.addf %18, %19 : vector<2x256xf32>
    %21 = vector.extract_strided_slice %20 {offsets = [0, 0], sizes = [2, 128], strides = [1, 1]} : vector<2x256xf32> to vector<2x128xf32>
    %22 = vector.extract_strided_slice %20 {offsets = [0, 128], sizes = [2, 128], strides = [1, 1]} : vector<2x256xf32> to vector<2x128xf32>
    %23 = arith.mulf %22, %22 : vector<2x128xf32>
    %cst_12 = arith.constant dense<0.000000e+00> : vector<2xf32>
    %24 = vector.multi_reduction <add>, %23, %cst_12 [1] : vector<2x128xf32> to vector<2xf32>
    %25 = vector.shape_cast %24 : vector<2xf32> to vector<2x1xf32>
    %26 = arith.mulf %21, %21 : vector<2x128xf32>
    %cst_13 = arith.constant dense<0.000000e+00> : vector<2xf32>
    %27 = vector.multi_reduction <add>, %26, %cst_13 [1] : vector<2x128xf32> to vector<2xf32>
    %28 = vector.shape_cast %27 : vector<2xf32> to vector<2x1xf32>
    %29 = arith.mulf %22, %21 : vector<2x128xf32>
    %cst_14 = arith.constant dense<0.000000e+00> : vector<2xf32>
    %30 = vector.multi_reduction <add>, %29, %cst_14 [1] : vector<2x128xf32> to vector<2xf32>
    %31 = vector.shape_cast %30 : vector<2xf32> to vector<2x1xf32>
    %32 = math.rsqrt %25 : vector<2x1xf32>
    %cst_15 = arith.constant 9.99999995E+11 : f32
    %33 = vector.broadcast %cst_15 : f32 to vector<2x1xf32>
    %34 = arith.minimumf %32, %33 : vector<2x1xf32>
    %35 = math.rsqrt %28 : vector<2x1xf32>
    %cst_16 = arith.constant 9.99999995E+11 : f32
    %36 = vector.broadcast %cst_16 : f32 to vector<2x1xf32>
    %37 = arith.minimumf %35, %36 : vector<2x1xf32>
    %38 = arith.mulf %31, %34 : vector<2x1xf32>
    %39 = arith.mulf %38, %37 : vector<2x1xf32>
    %cst_17 = arith.constant 2.000000e+00 : f32
    %40 = vector.broadcast %cst_17 : f32 to vector<2x1xf32>
    %41 = arith.mulf %40, %39 : vector<2x1xf32>
    %cst_18 = arith.constant 2.000000e+00 : f32
    %42 = vector.broadcast %cst_18 : f32 to vector<2x1xf32>
    %43 = arith.subf %42, %41 : vector<2x1xf32>
    %cst_19 = arith.constant 0.000000e+00 : f32
    %44 = vector.broadcast %cst_19 : f32 to vector<2x1xf32>
    %45 = arith.select %9, %43, %44 : vector<2x1xi1>, vector<2x1xf32>
    %c0_20 = arith.constant 0 : index
    %c0_21 = arith.constant 0 : index
    %46 = vector.load %arg2[%c0_20, %c0_21] : memref<2x1024xf32, #tpu.memory_space<vmem>>, vector<2x1024xf32>
    %47 = arith.truncf %46 : vector<2x1024xf32> to vector<2x1024xbf16>
    %cst_22 = arith.constant dense<0.000000e+00> : vector<2x32xf32>
    %48 = tpu.matmul %47, %0, %cst_22 {dimension_numbers = #tpu.dot_dimension_numbers<[1], [0], [0], [1], [0, 0, 1, 1], [], []>} : vector<2x1024xbf16>, vector<1024x32xbf16>, vector<2x32xf32> -> vector<2x32xf32>
    %49 = vector.broadcast %1 : vector<1x32xf32> to vector<2x32xf32>
    %50 = arith.addf %48, %49 : vector<2x32xf32>
    %cst_23 = arith.constant 0.000000e+00 : f32
    %51 = vector.broadcast %cst_23 : f32 to vector<2x32xf32>
    %52 = arith.maximumf %50, %51 : vector<2x32xf32>
    %53 = arith.truncf %52 : vector<2x32xf32> to vector<2x32xbf16>
    %cst_24 = arith.constant dense<0.000000e+00> : vector<2x256xf32>
    %54 = tpu.matmul %53, %2, %cst_24 {dimension_numbers = #tpu.dot_dimension_numbers<[1], [0], [0], [1], [0, 0, 1, 1], [], []>} : vector<2x32xbf16>, vector<32x256xbf16>, vector<2x256xf32> -> vector<2x256xf32>
    %55 = vector.broadcast %3 : vector<1x256xf32> to vector<2x256xf32>
    %56 = arith.addf %54, %55 : vector<2x256xf32>
    %57 = vector.extract_strided_slice %56 {offsets = [0, 0], sizes = [2, 128], strides = [1, 1]} : vector<2x256xf32> to vector<2x128xf32>
    %58 = vector.extract_strided_slice %56 {offsets = [0, 128], sizes = [2, 128], strides = [1, 1]} : vector<2x256xf32> to vector<2x128xf32>
    %59 = arith.mulf %58, %58 : vector<2x128xf32>
    %cst_25 = arith.constant dense<0.000000e+00> : vector<2xf32>
    %60 = vector.multi_reduction <add>, %59, %cst_25 [1] : vector<2x128xf32> to vector<2xf32>
    %61 = vector.shape_cast %60 : vector<2xf32> to vector<2x1xf32>
    %62 = arith.mulf %57, %57 : vector<2x128xf32>
    %cst_26 = arith.constant dense<0.000000e+00> : vector<2xf32>
    %63 = vector.multi_reduction <add>, %62, %cst_26 [1] : vector<2x128xf32> to vector<2xf32>
    %64 = vector.shape_cast %63 : vector<2xf32> to vector<2x1xf32>
    %65 = arith.mulf %58, %57 : vector<2x128xf32>
    %cst_27 = arith.constant dense<0.000000e+00> : vector<2xf32>
    %66 = vector.multi_reduction <add>, %65, %cst_27 [1] : vector<2x128xf32> to vector<2xf32>
    %67 = vector.shape_cast %66 : vector<2xf32> to vector<2x1xf32>
    %68 = math.rsqrt %61 : vector<2x1xf32>
    %cst_28 = arith.constant 9.99999995E+11 : f32
    %69 = vector.broadcast %cst_28 : f32 to vector<2x1xf32>
    %70 = arith.minimumf %68, %69 : vector<2x1xf32>
    %71 = math.rsqrt %64 : vector<2x1xf32>
    %cst_29 = arith.constant 9.99999995E+11 : f32
    %72 = vector.broadcast %cst_29 : f32 to vector<2x1xf32>
    %73 = arith.minimumf %71, %72 : vector<2x1xf32>
    %74 = arith.mulf %67, %70 : vector<2x1xf32>
    %75 = arith.mulf %74, %73 : vector<2x1xf32>
    %cst_30 = arith.constant 2.000000e+00 : f32
    %76 = vector.broadcast %cst_30 : f32 to vector<2x1xf32>
    %77 = arith.mulf %76, %75 : vector<2x1xf32>
    %cst_31 = arith.constant 2.000000e+00 : f32
    %78 = vector.broadcast %cst_31 : f32 to vector<2x1xf32>
    %79 = arith.subf %78, %77 : vector<2x1xf32>
    %cst_32 = arith.constant 0.000000e+00 : f32
    %80 = vector.broadcast %cst_32 : f32 to vector<2x1xf32>
    %81 = arith.select %9, %79, %80 : vector<2x1xi1>, vector<2x1xf32>
    %cst_33 = arith.constant dense<0.000000e+00> : vector<1xf32>
    %82 = vector.multi_reduction <add>, %45, %cst_33 [0] : vector<2x1xf32> to vector<1xf32>
    %83 = vector.shape_cast %82 : vector<1xf32> to vector<1x1xf32>
    %cst_34 = arith.constant dense<0.000000e+00> : vector<1xf32>
    %84 = vector.multi_reduction <add>, %81, %cst_34 [0] : vector<2x1xf32> to vector<1xf32>
    %85 = vector.shape_cast %84 : vector<1xf32> to vector<1x1xf32>
    %86 = tpu.iota {dimensions = array<i32: 0>} : vector<8x128xi32>
    %87 = tpu.iota {dimensions = array<i32: 1>} : vector<8x128xi32>
    %c0_i32 = arith.constant 0 : i32
    %88 = vector.broadcast %c0_i32 : i32 to vector<8x128xi32>
    %89 = arith.cmpi eq, %86, %88 : vector<8x128xi32>
    %c0_i32_35 = arith.constant 0 : i32
    %90 = vector.broadcast %c0_i32_35 : i32 to vector<8x128xi32>
    %91 = arith.cmpi eq, %87, %90 : vector<8x128xi32>
    %92 = arith.andi %89, %91 : vector<8x128xi1>
    %93 = vector.shape_cast %83 : vector<1x1xf32> to vector<1x1xf32>
    %94 = vector.broadcast %93 : vector<1x1xf32> to vector<8x128xf32>
    %c1_i32 = arith.constant 1 : i32
    %95 = vector.broadcast %c1_i32 : i32 to vector<8x128xi32>
    %96 = arith.cmpi eq, %86, %95 : vector<8x128xi32>
    %c0_i32_36 = arith.constant 0 : i32
    %97 = vector.broadcast %c0_i32_36 : i32 to vector<8x128xi32>
    %98 = arith.cmpi eq, %87, %97 : vector<8x128xi32>
    %99 = arith.andi %96, %98 : vector<8x128xi1>
    %100 = vector.shape_cast %85 : vector<1x1xf32> to vector<1x1xf32>
    %101 = vector.broadcast %100 : vector<1x1xf32> to vector<8x128xf32>
    %cst_37 = arith.constant 0.000000e+00 : f32
    %102 = vector.broadcast %cst_37 : f32 to vector<8x128xf32>
    %103 = arith.select %99, %101, %102 : vector<8x128xi1>, vector<8x128xf32>
    %104 = arith.select %92, %94, %103 : vector<8x128xi1>, vector<8x128xf32>
    %c0_38 = arith.constant 0 : index
    %c0_39 = arith.constant 0 : index
    %105 = vector.load %arg7[%c0_38, %c0_39] : memref<8x128xf32, #tpu.memory_space<vmem>>, vector<8x128xf32>
    tpu.vector_store %arg7[%c0_38, %c0_39], %104 {strides = array<i32>} : memref<8x128xf32, #tpu.memory_space<vmem>>, vector<8x128xf32>,
    return
  }
  func.func @transform_0(%arg0: i32) -> (i32, i32) {
    %c0_i32 = arith.constant 0 : i32
    %c0_i32_0 = arith.constant 0 : i32
    return %arg0, %c0_i32 : i32, i32
  }
  func.func @transform_1(%arg0: i32) -> (i32, i32) {
    %c0_i32 = arith.constant 0 : i32
    %c0_i32_0 = arith.constant 0 : i32
    return %arg0, %c0_i32 : i32, i32
  }
  func.func @transform_2(%arg0: i32) -> (i32, i32) {
    %c0_i32 = arith.constant 0 : i32
    %c0_i32_0 = arith.constant 0 : i32
    %c0_i32_1 = arith.constant 0 : i32
    return %c0_i32, %c0_i32_0 : i32, i32
  }
  func.func @transform_3(%arg0: i32) -> (i32, i32) {
    %c0_i32 = arith.constant 0 : i32
    %c0_i32_0 = arith.constant 0 : i32
    %c0_i32_1 = arith.constant 0 : i32
    return %c0_i32, %c0_i32_0 : i32, i32
  }
  func.func @transform_4(%arg0: i32) -> (i32, i32) {
    %c0_i32 = arith.constant 0 : i32
    %c0_i32_0 = arith.constant 0 : i32
    %c0_i32_1 = arith.constant 0 : i32
    return %c0_i32, %c0_i32_0 : i32, i32
  }
  func.func @transform_5(%arg0: i32) -> (i32, i32) {
    %c0_i32 = arith.constant 0 : i32
    %c0_i32_0 = arith.constant 0 : i32
    %c0_i32_1 = arith.constant 0 : i32
    return %c0_i32, %c0_i32_0 : i32, i32
  }
  func.func @transform_6(%arg0: i32) -> (i32, i32) {
    %c0_i32 = arith.constant 0 : i32
    %c0_i32_0 = arith.constant 0 : i32
    return %arg0, %c0_i32 : i32, i32
  }
}

module attributes {stable_mosaic.version = 11 : i64} {
  func.func @_byol_tile_kernel(%arg0: i32, %arg1: memref<2x1024xf32, #tpu.memory_space<vmem>>, %arg2: memref<2x1024xf32, #tpu.memory_space<vmem>>, %arg3: memref<1024x32xbf16, #tpu.memory_space<vmem>>, %arg4: memref<1x32xf32, #tpu.memory_space<vmem>>, %arg5: memref<32x256xbf16, #tpu.memory_space<vmem>>, %arg6: memref<1x256xf32, #tpu.memory_space<vmem>>, %arg7: memref<8x128xf32, #tpu.memory_space<vmem>>) attributes {dimension_semantics = [#tpu.dimension_semantics<parallel>], iteration_bounds = array<i64: 1>, scalar_prefetch = 0 : i64, scratch_operands = 0 : i64, tpu.core_type = #tpu.core_type<tc>, window_params = [{transform_indices = @transform_0, window_bounds = array<i64: 2, 1024>}, {transform_indices = @transform_1, window_bounds = array<i64: 2, 1024>}, {pipeline_mode = #tpu.pipeline_mode<synchronous>, transform_indices = @transform_2, window_bounds = array<i64: 1024, 32>}, {pipeline_mode = #tpu.pipeline_mode<synchronous>, transform_indices = @transform_3, window_bounds = array<i64: 1, 32>}, {pipeline_mode = #tpu.pipeline_mode<synchronous>, transform_indices = @transform_4, window_bounds = array<i64: 32, 256>}, {pipeline_mode = #tpu.pipeline_mode<synchronous>, transform_indices = @transform_5, window_bounds = array<i64: 1, 256>}, {transform_indices = @transform_6, window_bounds = array<i64: 8, 128>}]} {
    %c0 = arith.constant 0 : index
    %c0_0 = arith.constant 0 : index
    %0 = vector.load %arg3[%c0, %c0_0] : memref<1024x32xbf16, #tpu.memory_space<vmem>>, vector<1024x32xbf16>
    %c0_1 = arith.constant 0 : index
    %c0_2 = arith.constant 0 : index
    %1 = vector.load %arg4[%c0_1, %c0_2] : memref<1x32xf32, #tpu.memory_space<vmem>>, vector<1x32xf32>
    %c0_3 = arith.constant 0 : index
    %c0_4 = arith.constant 0 : index
    %2 = vector.load %arg5[%c0_3, %c0_4] : memref<32x256xbf16, #tpu.memory_space<vmem>>, vector<32x256xbf16>
    %c0_5 = arith.constant 0 : index
    %c0_6 = arith.constant 0 : index
    %3 = vector.load %arg6[%c0_5, %c0_6] : memref<1x256xf32, #tpu.memory_space<vmem>>, vector<1x256xf32>
    %c2_i32 = arith.constant 2 : i32
    %4 = arith.muli %arg0, %c2_i32 : i32
    %5 = tpu.iota {dimensions = array<i32: 0>} : vector<2x1xi32>
    %6 = vector.broadcast %4 : i32 to vector<2x1xi32>
    %7 = arith.addi %6, %5 : vector<2x1xi32>
    %c2_i32_7 = arith.constant 2 : i32
    %8 = vector.broadcast %c2_i32_7 : i32 to vector<2x1xi32>
    %9 = arith.cmpi slt, %7, %8 : vector<2x1xi32>
    %c0_8 = arith.constant 0 : index
    %c0_9 = arith.constant 0 : index
    %10 = vector.load %arg1[%c0_8, %c0_9] : memref<2x1024xf32, #tpu.memory_space<vmem>>, vector<2x1024xf32>
    %11 = arith.truncf %10 : vector<2x1024xf32> to vector<2x1024xbf16>
    %cst = arith.constant dense<0.000000e+00> : vector<2x32xf32>
    %12 = tpu.matmul %11, %0, %cst {dimension_numbers = #tpu.dot_dimension_numbers<[1], [0], [0], [1], [0, 0, 1, 1], [], []>} : vector<2x1024xbf16>, vector<1024x32xbf16>, vector<2x32xf32> -> vector<2x32xf32>
    %13 = vector.broadcast %1 : vector<1x32xf32> to vector<2x32xf32>
    %14 = arith.addf %12, %13 : vector<2x32xf32>
    %cst_10 = arith.constant 0.000000e+00 : f32
    %15 = vector.broadcast %cst_10 : f32 to vector<2x32xf32>
    %16 = arith.maximumf %14, %15 : vector<2x32xf32>
    %17 = arith.truncf %16 : vector<2x32xf32> to vector<2x32xbf16>
    %cst_11 = arith.constant dense<0.000000e+00> : vector<2x256xf32>
    %18 = tpu.matmul %17, %2, %cst_11 {dimension_numbers = #tpu.dot_dimension_numbers<[1], [0], [0], [1], [0, 0, 1, 1], [], []>} : vector<2x32xbf16>, vector<32x256xbf16>, vector<2x256xf32> -> vector<2x256xf32>
    %19 = vector.broadcast %3 : vector<1x256xf32> to vector<2x256xf32>
    %20 = arith.addf %18, %19 : vector<2x256xf32>
    %21 = vector.extract_strided_slice %20 {offsets = [0, 0], sizes = [2, 128], strides = [1, 1]} : vector<2x256xf32> to vector<2x128xf32>
    %22 = vector.extract_strided_slice %20 {offsets = [0, 128], sizes = [2, 128], strides = [1, 1]} : vector<2x256xf32> to vector<2x128xf32>
    %23 = arith.mulf %22, %22 : vector<2x128xf32>
    %cst_12 = arith.constant dense<0.000000e+00> : vector<2xf32>
    %24 = vector.multi_reduction <add>, %23, %cst_12 [1] : vector<2x128xf32> to vector<2xf32>
    %25 = vector.shape_cast %24 : vector<2xf32> to vector<2x1xf32>
    %26 = arith.mulf %21, %21 : vector<2x128xf32>
    %cst_13 = arith.constant dense<0.000000e+00> : vector<2xf32>
    %27 = vector.multi_reduction <add>, %26, %cst_13 [1] : vector<2x128xf32> to vector<2xf32>
    %28 = vector.shape_cast %27 : vector<2xf32> to vector<2x1xf32>
    %29 = arith.mulf %22, %21 : vector<2x128xf32>
    %cst_14 = arith.constant dense<0.000000e+00> : vector<2xf32>
    %30 = vector.multi_reduction <add>, %29, %cst_14 [1] : vector<2x128xf32> to vector<2xf32>
    %31 = vector.shape_cast %30 : vector<2xf32> to vector<2x1xf32>
    %32 = math.rsqrt %25 : vector<2x1xf32>
    %cst_15 = arith.constant 9.99999995E+11 : f32
    %33 = vector.broadcast %cst_15 : f32 to vector<2x1xf32>
    %34 = arith.minimumf %32, %33 : vector<2x1xf32>
    %35 = math.rsqrt %28 : vector<2x1xf32>
    %cst_16 = arith.constant 9.99999995E+11 : f32
    %36 = vector.broadcast %cst_16 : f32 to vector<2x1xf32>
    %37 = arith.minimumf %35, %36 : vector<2x1xf32>
    %38 = arith.mulf %31, %34 : vector<2x1xf32>
    %39 = arith.mulf %38, %37 : vector<2x1xf32>
    %cst_17 = arith.constant 2.000000e+00 : f32
    %40 = vector.broadcast %cst_17 : f32 to vector<2x1xf32>
    %41 = arith.mulf %40, %39 : vector<2x1xf32>
    %cst_18 = arith.constant 2.000000e+00 : f32
    %42 = vector.broadcast %cst_18 : f32 to vector<2x1xf32>
    %43 = arith.subf %42, %41 : vector<2x1xf32>
    %cst_19 = arith.constant 0.000000e+00 : f32
    %44 = vector.broadcast %cst_19 : f32 to vector<2x1xf32>
    %45 = arith.select %9, %43, %44 : vector<2x1xi1>, vector<2x1xf32>
    %c0_20 = arith.constant 0 : index
    %c0_21 = arith.constant 0 : index
    %46 = vector.load %arg2[%c0_20, %c0_21] : memref<2x1024xf32, #tpu.memory_space<vmem>>, vector<2x1024xf32>
    %47 = arith.truncf %46 : vector<2x1024xf32> to vector<2x1024xbf16>
    %cst_22 = arith.constant dense<0.000000e+00> : vector<2x32xf32>
    %48 = tpu.matmul %47, %0, %cst_22 {dimension_numbers = #tpu.dot_dimension_numbers<[1], [0], [0], [1], [0, 0, 1, 1], [], []>} : vector<2x1024xbf16>, vector<1024x32xbf16>, vector<2x32xf32> -> vector<2x32xf32>
    %49 = vector.broadcast %1 : vector<1x32xf32> to vector<2x32xf32>
    %50 = arith.addf %48, %49 : vector<2x32xf32>
    %cst_23 = arith.constant 0.000000e+00 : f32
    %51 = vector.broadcast %cst_23 : f32 to vector<2x32xf32>
    %52 = arith.maximumf %50, %51 : vector<2x32xf32>
    %53 = arith.truncf %52 : vector<2x32xf32> to vector<2x32xbf16>
    %cst_24 = arith.constant dense<0.000000e+00> : vector<2x256xf32>
    %54 = tpu.matmul %53, %2, %cst_24 {dimension_numbers = #tpu.dot_dimension_numbers<[1], [0], [0], [1], [0, 0, 1, 1], [], []>} : vector<2x32xbf16>, vector<32x256xbf16>, vector<2x256xf32> -> vector<2x256xf32>
    %55 = vector.broadcast %3 : vector<1x256xf32> to vector<2x256xf32>
    %56 = arith.addf %54, %55 : vector<2x256xf32>
    %57 = vector.extract_strided_slice %56 {offsets = [0, 0], sizes = [2, 128], strides = [1, 1]} : vector<2x256xf32> to vector<2x128xf32>
    %58 = vector.extract_strided_slice %56 {offsets = [0, 128], sizes = [2, 128], strides = [1, 1]} : vector<2x256xf32> to vector<2x128xf32>
    %59 = arith.mulf %58, %58 : vector<2x128xf32>
    %cst_25 = arith.constant dense<0.000000e+00> : vector<2xf32>
    %60 = vector.multi_reduction <add>, %59, %cst_25 [1] : vector<2x128xf32> to vector<2xf32>
    %61 = vector.shape_cast %60 : vector<2xf32> to vector<2x1xf32>
    %62 = arith.mulf %57, %57 : vector<2x128xf32>
    %cst_26 = arith.constant dense<0.000000e+00> : vector<2xf32>
    %63 = vector.multi_reduction <add>, %62, %cst_26 [1] : vector<2x128xf32> to vector<2xf32>
    %64 = vector.shape_cast %63 : vector<2xf32> to vector<2x1xf32>
    %65 = arith.mulf %58, %57 : vector<2x128xf32>
    %cst_27 = arith.constant dense<0.000000e+00> : vector<2xf32>
    %66 = vector.multi_reduction <add>, %65, %cst_27 [1] : vector<2x128xf32> to vector<2xf32>
    %67 = vector.shape_cast %66 : vector<2xf32> to vector<2x1xf32>
    %68 = math.rsqrt %61 : vector<2x1xf32>
    %cst_28 = arith.constant 9.99999995E+11 : f32
    %69 = vector.broadcast %cst_28 : f32 to vector<2x1xf32>
    %70 = arith.minimumf %68, %69 : vector<2x1xf32>
    %71 = math.rsqrt %64 : vector<2x1xf32>
    %cst_29 = arith.constant 9.99999995E+11 : f32
    %72 = vector.broadcast %cst_29 : f32 to vector<2x1xf32>
    %73 = arith.minimumf %71, %72 : vector<2x1xf32>
    %74 = arith.mulf %67, %70 : vector<2x1xf32>
    %75 = arith.mulf %74, %73 : vector<2x1xf32>
    %cst_30 = arith.constant 2.000000e+00 : f32
    %76 = vector.broadcast %cst_30 : f32 to vector<2x1xf32>
    %77 = arith.mulf %76, %75 : vector<2x1xf32>
    %cst_31 = arith.constant 2.000000e+00 : f32
    %78 = vector.broadcast %cst_31 : f32 to vector<2x1xf32>
    %79 = arith.subf %78, %77 : vector<2x1xf32>
    %cst_32 = arith.constant 0.000000e+00 : f32
    %80 = vector.broadcast %cst_32 : f32 to vector<2x1xf32>
    %81 = arith.select %9, %79, %80 : vector<2x1xi1>, vector<2x1xf32>
    %cst_33 = arith.constant dense<0.000000e+00> : vector<1xf32>
    %82 = vector.multi_reduction <add>, %45, %cst_33 [0] : vector<2x1xf32> to vector<1xf32>
    %83 = vector.shape_cast %82 : vector<1xf32> to vector<1x1xf32>
    %cst_34 = arith.constant dense<0.000000e+00> : vector<1xf32>
    %84 = vector.multi_reduction <add>, %81, %cst_34 [0] : vector<2x1xf32> to vector<1xf32>
    %85 = vector.shape_cast %84 : vector<1xf32> to vector<1x1xf32>
    %86 = tpu.iota {dimensions = array<i32: 0>} : vector<8x128xi32>
    %87 = tpu.iota {dimensions = array<i32: 1>} : vector<8x128xi32>
    %c0_i32 = arith.constant 0 : i32
    %88 = vector.broadcast %c0_i32 : i32 to vector<8x128xi32>
    %89 = arith.cmpi eq, %86, %88 : vector<8x128xi32>
    %c0_i32_35 = arith.constant 0 : i32
    %90 = vector.broadcast %c0_i32_35 : i32 to vector<8x128xi32>
    %91 = arith.cmpi eq, %87, %90 : vector<8x128xi32>
    %92 = arith.andi %89, %91 : vector<8x128xi1>
    %93 = vector.shape_cast %83 : vector<1x1xf32> to vector<1x1xf32>
    %94 = vector.broadcast %93 : vector<1x1xf32> to vector<8x128xf32>
    %c1_i32 = arith.constant 1 : i32
    %95 = vector.broadcast %c1_i32 : i32 to vector<8x128xi32>
    %96 = arith.cmpi eq, %86, %95 : vector<8x128xi32>
    %c0_i32_36 = arith.constant 0 : i32
    %97 = vector.broadcast %c0_i32_36 : i32 to vector<8x128xi32>
    %98 = arith.cmpi eq, %87, %97 : vector<8x128xi32>
    %99 = arith.andi %96, %98 : vector<8x128xi1>
    %100 = vector.shape_cast %85 : vector<1x1xf32> to vector<1x1xf32>
    %101 = vector.broadcast %100 : vector<1x1xf32> to vector<8x128xf32>
    %cst_37 = arith.constant 0.000000e+00 : f32
    %102 = vector.broadcast %cst_37 : f32 to vector<8x128xf32>
    %103 = arith.select %99, %101, %102 : vector<8x128xi1>, vector<8x128xf32>
    %104 = arith.select %92, %94, %103 : vector<8x128xi1>, vector<8x128xf32>
    %c0_38 = arith.constant 0 : index
    %c0_39 = arith.constant 0 : index
    %105 = vector.load %arg7[%c0_38, %c0_39] : memref<8x128xf32, #tpu.memory_space<vmem>>, vector<8x128xf32>
    tpu.vector_store %arg7[%c0_38, %c0_39], %104 {strides = array<i32>} : memref<8x128xf32, #tpu.memory_space<vmem>>, vector<8x128xf32>,
    return
  }
  func.func @transform_0(%arg0: i32) -> (i32, i32) {
    %c0_i32 = arith.constant 0 : i32
    %c0_i32_0 = arith.constant 0 : i32
    return %arg0, %c0_i32 : i32, i32
  }
  func.func @transform_1(%arg0: i32) -> (i32, i32) {
    %c0_i32 = arith.constant 0 : i32
    %c0_i32_0 = arith.constant 0 : i32
    return %arg0, %c0_i32 : i32, i32
  }
  func.func @transform_2(%arg0: i32) -> (i32, i32) {
    %c0_i32 = arith.constant 0 : i32
    %c0_i32_0 = arith.constant 0 : i32
    %c0_i32_1 = arith.constant 0 : i32
    return %c0_i32, %c0_i32_0 : i32, i32
  }
  func.func @transform_3(%arg0: i32) -> (i32, i32) {
    %c0_i32 = arith.constant 0 : i32
    %c0_i32_0 = arith.constant 0 : i32
    %c0_i32_1 = arith.constant 0 : i32
    return %c0_i32, %c0_i32_0 : i32, i32
  }
  func.func @transform_4(%arg0: i32) -> (i32, i32) {
    %c0_i32 = arith.constant 0 : i32
    %c0_i32_0 = arith.constant 0 : i32
    %c0_i32_1 = arith.constant 0 : i32
    return %c0_i32, %c0_i32_0 : i32, i32
  }
  func.func @transform_5(%arg0: i32) -> (i32, i32) {
    %c0_i32 = arith.constant 0 : i32
    %c0_i32_0 = arith.constant 0 : i32
    %c0_i32_1 = arith.constant 0 : i32
    return %c0_i32, %c0_i32_0 : i32, i32
  }
  func.func @transform_6(%arg0: i32) -> (i32, i32) {
    %c0_i32 = arith.constant 0 : i32
    %c0_i32_0 = arith.constant 0 : i32
    return %arg0, %c0_i32 : i32, i32
  }
}

</mosaic_0001>

<llo_original>
// kernel: byol_forward.1
$region0: #{byol_forward.1}
  #allocation0 [shape = 'u32[]', space=smem, size = 0x4, offset = 0x4, fixed_abs, tag = 'smem constant byte address 0x4 - core index']
  #allocation1 [shape = 'u32[144,128]{1,0:T(1,128)}', space=vmem, size = 0x12000, scoped, tag = 'internal scratch']
  %s0 = inlined_call_operand.vmem [shape: f32[2,1024], index: 0, kind: input, shape index: {}]
  %s1 = inlined_call_operand.vmem [shape: f32[2,1024], index: 1, kind: input, shape index: {}]
  %s2 = inlined_call_operand.vmem [shape: bf16[1024,32], index: 2, kind: input, shape index: {}]
  %s3 = inlined_call_operand.vmem [shape: f32[1,32], index: 3, kind: input, shape index: {}]
  %s4 = inlined_call_operand.vmem [shape: bf16[32,256], index: 4, kind: input, shape index: {}]
  %s5 = inlined_call_operand.vmem [shape: f32[1,256], index: 5, kind: input, shape index: {}]
  %s6 = inlined_call_operand.vmem [shape: f32[8,128], index: 6, kind: output, shape index: {}]
  %s7 = sld [smem:[#allocation0]]
  $region34: #{byol_forward.1} parent=0
    _
  %s9 = ssub.s32 1, %s7
  %s10 = scalar_select 0, %s9, %s7
  // Predicated region
  $region2: #{byol_forward.1} parent=0 // pred_check
    _
  $region3: #{byol_forward.1} parent=0 // pred_check_branch
    %12 = sbr.rel (0) target = $region5
  $region4: #{byol_forward.1} parent=0 // pred_region
    _
  $region5: #{byol_forward.1} parent=0 // pred_fallthru
    _
  // Predicated region
  $region6: #{byol_forward.1} parent=0 // pred_check
    _
  $region7: #{byol_forward.1} parent=0 // pred_check_branch
    %14 = sbr.rel (0) target = $region9
  $region8: #{byol_forward.1} parent=0 // pred_region
    _
  $region9: #{byol_forward.1} parent=0 // pred_fallthru
    _
  // Predicated region
  $region10: #{byol_forward.1} parent=0 // pred_check
    _
  $region11: #{byol_forward.1} parent=0 // pred_check_branch
    %16 = sbr.rel (0) target = $region13
  $region12: #{byol_forward.1} parent=0 // pred_region
    _
  $region13: #{byol_forward.1} parent=0 // pred_fallthru
    _
  // Predicated region
  $region14: #{byol_forward.1} parent=0 // pred_check
    _
  $region15: #{byol_forward.1} parent=0 // pred_check_branch
    %18 = sbr.rel (0) target = $region17
  $region16: #{byol_forward.1} parent=0 // pred_region
    _
  $region17: #{byol_forward.1} parent=0 // pred_fallthru
    _
  // Predicated region
  $region18: #{byol_forward.1} parent=0 // pred_check
    _
  $region19: #{byol_forward.1} parent=0 // pred_check_branch
    %20 = sbr.rel (0) target = $region21
  $region20: #{byol_forward.1} parent=0 // pred_region
    _
  $region21: #{byol_forward.1} parent=0 // pred_fallthru
    _
  // Predicated region
  $region22: #{byol_forward.1} parent=0 // pred_check
    _
  $region23: #{byol_forward.1} parent=0 // pred_check_branch
    %22 = sbr.rel (0) target = $region25
  $region24: #{byol_forward.1} parent=0 // pred_region
    _
  $region25: #{byol_forward.1} parent=0 // pred_fallthru
    _
  %v24 = vld [vmem:[%s2] sm:$0xf]
  %v25 = vld [vmem:[%s2 + $0x4] sm:$0xf]
  %v26 = vld [vmem:[%s2 + $0x8] sm:$0xf]
  %v27 = vld [vmem:[%s2 + $0xc] sm:$0xf]
  %v28 = vld [vmem:[%s2 + $0x10] sm:$0xf]
  %v29 = vld [vmem:[%s2 + $0x14] sm:$0xf]
  %v30 = vld [vmem:[%s2 + $0x18] sm:$0xf]
  %v31 = vld [vmem:[%s2 + $0x1c] sm:$0xf]
  %v32 = vld [vmem:[%s2 + $0x20] sm:$0xf]
  %v33 = vld [vmem:[%s2 + $0x24] sm:$0xf]
  %v34 = vld [vmem:[%s2 + $0x28] sm:$0xf]
  %v35 = vld [vmem:[%s2 + $0x2c] sm:$0xf]
  %v36 = vld [vmem:[%s2 + $0x30] sm:$0xf]
  %v37 = vld [vmem:[%s2 + $0x34] sm:$0xf]
  %v38 = vld [vmem:[%s2 + $0x38] sm:$0xf]
  %v39 = vld [vmem:[%s2 + $0x3c] sm:$0xf]
  %v40 = vld [vmem:[%s2 + $0x40] sm:$0xf]
  %v41 = vld [vmem:[%s2 + $0x44] sm:$0xf]
  %v42 = vld [vmem:[%s2 + $0x48] sm:$0xf]
  %v43 = vld [vmem:[%s2 + $0x4c] sm:$0xf]
  %v44 = vld [vmem:[%s2 + $0x50] sm:$0xf]
  %v45 = vld [vmem:[%s2 + $0x54] sm:$0xf]
  %v46 = vld [vmem:[%s2 + $0x58] sm:$0xf]
  %v47 = vld [vmem:[%s2 + $0x5c] sm:$0xf]
  %v48 = vld [vmem:[%s2 + $0x60] sm:$0xf]
  %v49 = vld [vmem:[%s2 + $0x64] sm:$0xf]
  %v50 = vld [vmem:[%s2 + $0x68] sm:$0xf]
  %v51 = vld [vmem:[%s2 + $0x6c] sm:$0xf]
  %v52 = vld [vmem:[%s2 + $0x70] sm:$0xf]
  %v53 = vld [vmem:[%s2 + $0x74] sm:$0xf]
  %v54 = vld [vmem:[%s2 + $0x78] sm:$0xf]
  %v55 = vld [vmem:[%s2 + $0x7c] sm:$0xf]
  %v56 = vld [vmem:[%s2 + $0x80] sm:$0xf]
  %v57 = vld [vmem:[%s2 + $0x84] sm:$0xf]
  %v58 = vld [vmem:[%s2 + $0x88] sm:$0xf]
  %v59 = vld [vmem:[%s2 + $0x8c] sm:$0xf]
  %v60 = vld [vmem:[%s2 + $0x90] sm:$0xf]
  %v61 = vld [vmem:[%s2 + $0x94] sm:$0xf]
  %v62 = vld [vmem:[%s2 + $0x98] sm:$0xf]
  %v63 = vld [vmem:[%s2 + $0x9c] sm:$0xf]
  %v64 = vld [vmem:[%s2 + $0xa0] sm:$0xf]
  %v65 = vld [vmem:[%s2 + $0xa4] sm:$0xf]
  %v66 = vld [vmem:[%s2 + $0xa8] sm:$0xf]
  %v67 = vld [vmem:[%s2 + $0xac] sm:$0xf]
  %v68 = vld [vmem:[%s2 + $0xb0] sm:$0xf]
  %v69 = vld [vmem:[%s2 + $0xb4] sm:$0xf]
  %v70 = vld [vmem:[%s2 + $0xb8] sm:$0xf]
  %v71 = vld [vmem:[%s2 + $0xbc] sm:$0xf]
  %v72 = vld [vmem:[%s2 + $0xc0] sm:$0xf]
  %v73 = vld [vmem:[%s2 + $0xc4] sm:$0xf]
  %v74 = vld [vmem:[%s2 + $0xc8] sm:$0xf]
  %v75 = vld [vmem:[%s2 + $0xcc] sm:$0xf]
  %v76 = vld [vmem:[%s2 + $0xd0] sm:$0xf]
  %v77 = vld [vmem:[%s2 + $0xd4] sm:$0xf]
  %v78 = vld [vmem:[%s2 + $0xd8] sm:$0xf]
  %v79 = vld [vmem:[%s2 + $0xdc] sm:$0xf]
  %v80 = vld [vmem:[%s2 + $0xe0] sm:$0xf]
  %v81 = vld [vmem:[%s2 + $0xe4] sm:$0xf]
  %v82 = vld [vmem:[%s2 + $0xe8] sm:$0xf]
  %v83 = vld [vmem:[%s2 + $0xec] sm:$0xf]
  %v84 = vld [vmem:[%s2 + $0xf0] sm:$0xf]
  %v85 = vld [vmem:[%s2 + $0xf4] sm:$0xf]
  %v86 = vld [vmem:[%s2 + $0xf8] sm:$0xf]
  %v87 = vld [vmem:[%s2 + $0xfc] sm:$0xf]
  %v88 = vld [vmem:[%s2 + $0x100] sm:$0xf]
  %v89 = vld [vmem:[%s2 + $0x104] sm:$0xf]
  %v90 = vld [vmem:[%s2 + $0x108] sm:$0xf]
  %v91 = vld [vmem:[%s2 + $0x10c] sm:$0xf]
  %v92 = vld [vmem:[%s2 + $0x110] sm:$0xf]
  %v93 = vld [vmem:[%s2 + $0x114] sm:$0xf]
  %v94 = vld [vmem:[%s2 + $0x118] sm:$0xf]
  %v95 = vld [vmem:[%s2 + $0x11c] sm:$0xf]
  %v96 = vld [vmem:[%s2 + $0x120] sm:$0xf]
  %v97 = vld [vmem:[%s2 + $0x124] sm:$0xf]
  %v98 = vld [vmem:[%s2 + $0x128] sm:$0xf]
  %v99 = vld [vmem:[%s2 + $0x12c] sm:$0xf]
  %v100 = vld [vmem:[%s2 + $0x130] sm:$0xf]
  %v101 = vld [vmem:[%s2 + $0x134] sm:$0xf]
  %v102 = vld [vmem:[%s2 + $0x138] sm:$0xf]
  %v103 = vld [vmem:[%s2 + $0x13c] sm:$0xf]
  %v104 = vld [vmem:[%s2 + $0x140] sm:$0xf]
  %v105 = vld [vmem:[%s2 + $0x144] sm:$0xf]
  %v106 = vld [vmem:[%s2 + $0x148] sm:$0xf]
  %v107 = vld [vmem:[%s2 + $0x14c] sm:$0xf]
  %v108 = vld [vmem:[%s2 + $0x150] sm:$0xf]
  %v109 = vld [vmem:[%s2 + $0x154] sm:$0xf]
  %v110 = vld [vmem:[%s2 + $0x158] sm:$0xf]
  %v111 = vld [vmem:[%s2 + $0x15c] sm:$0xf]
  %v112 = vld [vmem:[%s2 + $0x160] sm:$0xf]
  %v113 = vld [vmem:[%s2 + $0x164] sm:$0xf]
  %v114 = vld [vmem:[%s2 + $0x168] sm:$0xf]
  %v115 = vld [vmem:[%s2 + $0x16c] sm:$0xf]
  %v116 = vld [vmem:[%s2 + $0x170] sm:$0xf]
  %v117 = vld [vmem:[%s2 + $0x174] sm:$0xf]
  %v118 = vld [vmem:[%s2 + $0x178] sm:$0xf]
  %v119 = vld [vmem:[%s2 + $0x17c] sm:$0xf]
  %v120 = vld [vmem:[%s2 + $0x180] sm:$0xf]
  %v121 = vld [vmem:[%s2 + $0x184] sm:$0xf]
  %v122 = vld [vmem:[%s2 + $0x188] sm:$0xf]
  %v123 = vld [vmem:[%s2 + $0x18c] sm:$0xf]
  %v124 = vld [vmem:[%s2 + $0x190] sm:$0xf]
  %v125 = vld [vmem:[%s2 + $0x194] sm:$0xf]
  %v126 = vld [vmem:[%s2 + $0x198] sm:$0xf]
  %v127 = vld [vmem:[%s2 + $0x19c] sm:$0xf]
  %v128 = vld [vmem:[%s2 + $0x1a0] sm:$0xf]
  %v129 = vld [vmem:[%s2 + $0x1a4] sm:$0xf]
  %v130 = vld [vmem:[%s2 + $0x1a8] sm:$0xf]
  %v131 = vld [vmem:[%s2 + $0x1ac] sm:$0xf]
  %v132 = vld [vmem:[%s2 + $0x1b0] sm:$0xf]
  %v133 = vld [vmem:[%s2 + $0x1b4] sm:$0xf]
  %v134 = vld [vmem:[%s2 + $0x1b8] sm:$0xf]
  %v135 = vld [vmem:[%s2 + $0x1bc] sm:$0xf]
  %v136 = vld [vmem:[%s2 + $0x1c0] sm:$0xf]
  %v137 = vld [vmem:[%s2 + $0x1c4] sm:$0xf]
  %v138 = vld [vmem:[%s2 + $0x1c8] sm:$0xf]
  %v139 = vld [vmem:[%s2 + $0x1cc] sm:$0xf]
  %v140 = vld [vmem:[%s2 + $0x1d0] sm:$0xf]
  %v141 = vld [vmem:[%s2 + $0x1d4] sm:$0xf]
  %v142 = vld [vmem:[%s2 + $0x1d8] sm:$0xf]
  %v143 = vld [vmem:[%s2 + $0x1dc] sm:$0xf]
  %v144 = vld [vmem:[%s2 + $0x1e0] sm:$0xf]
  %v145 = vld [vmem:[%s2 + $0x1e4] sm:$0xf]
  %v146 = vld [vmem:[%s2 + $0x1e8] sm:$0xf]
  %v147 = vld [vmem:[%s2 + $0x1ec] sm:$0xf]
  %v148 = vld [vmem:[%s2 + $0x1f0] sm:$0xf]
  %v149 = vld [vmem:[%s2 + $0x1f4] sm:$0xf]
  %v150 = vld [vmem:[%s2 + $0x1f8] sm:$0xf]
  %v151 = vld [vmem:[%s2 + $0x1fc] sm:$0xf]
  %v152 = vld [vmem:[%s3] sm:$0x1]
  %v153 = vld [vmem:[%s4] sm:$0xff]
  %v154 = vld [vmem:[%s4 + $0x8] sm:$0xff]
  %v155 = vld [vmem:[%s4 + $0x10] sm:$0xff]
  %v156 = vld [vmem:[%s4 + $0x18] sm:$0xff]
  %v157 = vld [vmem:[%s5] sm:$0x3]
  %s158 = smul.u32 0, 2
  %v159 = vlaneseq
  %v160 = vshrl.u32 %v159, 7
  %v161 = vstv %s158
  %v162 = vadd.s32 %v161, %v160
  %vm163 = vcmp.lt.s32.totalorder %v162, 2
  %v164 = vld [vmem:[%s0] sm:$0xff]
  %v165 = vld [vmem:[%s0 + $0x8] sm:$0xff]
  %v168 = vcombine.high %v164, %v164
  %v170 = vunpack.c.l.s4 1983009808
  %v171 = vunpack.c.0.s8 %v170
  %v172 = vlaneseq
  %v173 = vshrl.u32 %v172, 7
  %v174 = vsub.s32 %v171, %v173
  %v175 = vrot.slane %v164, %v174
  %v177 = vunpack.c.l.s4 1983009808
  %v178 = vunpack.c.0.s8 %v177
  %v179 = vlaneseq
  %v180 = vshrl.u32 %v179, 7
  %v181 = vsub.s32 %v178, %v180
  %v182 = vrot.slane %v168, %v181
  %v183 = vcombine.high %v175, %v175
  %v184 = vcombine.high %v182, %v182
  %v185 = vcombine.high %v165, %v165
  %v187 = vunpack.c.l.s4 1983009808
  %v188 = vunpack.c.0.s8 %v187
  %v189 = vlaneseq
  %v190 = vshrl.u32 %v189, 7
  %v191 = vsub.s32 %v188, %v190
  %v192 = vrot.slane %v165, %v191
  %v194 = vunpack.c.l.s4 1983009808
  %v195 = vunpack.c.0.s8 %v194
  %v196 = vlaneseq
  %v197 = vshrl.u32 %v196, 7
  %v198 = vsub.s32 %v195, %v197
  %v199 = vrot.slane %v185, %v198
  %v200 = vcombine.high %v192, %v192
  %v201 = vcombine.high %v199, %v199
  %v210 = vpack.c.bf16 %v175, %v175
  %v211 = vpack.c.bf16 %v183, %v183
  %v212 = vpack.c.bf16 %v182, %v182
  %v213 = vpack.c.bf16 %v184, %v184
  %v214 = vpack.c.bf16 %v192, %v192
  %v215 = vpack.c.bf16 %v200, %v200
  %v216 = vpack.c.bf16 %v199, %v199
  %v217 = vpack.c.bf16 %v201, %v201
  %v219 = vlaneseq
  %v220 = vshrl.u32 %v219, 7
  %v221 = vsub.s32 0, %v220
  %v222 = vrot.slane %v152, %v221
  %v352 = vunpack.c.l.b16 %v24
  %v353 = vunpack.c.l.b16 %v25
  %v354 = vunpack.c.l.b16 %v26
  %v355 = vunpack.c.l.b16 %v27
  %v356 = vunpack.c.l.b16 %v28
  %v357 = vunpack.c.l.b16 %v29
  %v358 = vunpack.c.l.b16 %v30
  %v359 = vunpack.c.l.b16 %v31
  %v360 = vunpack.c.l.b16 %v32
  %v361 = vunpack.c.l.b16 %v33
  %v362 = vunpack.c.l.b16 %v34
  %v363 = vunpack.c.l.b16 %v35
  %v364 = vunpack.c.l.b16 %v36
  %v365 = vunpack.c.l.b16 %v37
  %v366 = vunpack.c.l.b16 %v38
  %v367 = vunpack.c.l.b16 %v39
  %v368 = vunpack.c.l.b16 %v40
  %v369 = vunpack.c.l.b16 %v41
  %v370 = vunpack.c.l.b16 %v42
  %v371 = vunpack.c.l.b16 %v43
  %v372 = vunpack.c.l.b16 %v44
  %v373 = vunpack.c.l.b16 %v45
  %v374 = vunpack.c.l.b16 %v46
  %v375 = vunpack.c.l.b16 %v47
  %v376 = vunpack.c.l.b16 %v48
  %v377 = vunpack.c.l.b16 %v49
  %v378 = vunpack.c.l.b16 %v50
  %v379 = vunpack.c.l.b16 %v51
  %v380 = vunpack.c.l.b16 %v52
  %v381 = vunpack.c.l.b16 %v53
  %v382 = vunpack.c.l.b16 %v54
  %v383 = vunpack.c.l.b16 %v55
  %v384 = vunpack.c.l.b16 %v56
  %v385 = vunpack.c.l.b16 %v57
  %v386 = vunpack.c.l.b16 %v58
  %v387 = vunpack.c.l.b16 %v59
  %v388 = vunpack.c.l.b16 %v60
  %v389 = vunpack.c.l.b16 %v61
  %v390 = vunpack.c.l.b16 %v62
  %v391 = vunpack.c.l.b16 %v63
  %v392 = vunpack.c.l.b16 %v64
  %v393 = vunpack.c.l.b16 %v65
  %v394 = vunpack.c.l.b16 %v66
  %v395 = vunpack.c.l.b16 %v67
  %v396 = vunpack.c.l.b16 %v68
  %v397 = vunpack.c.l.b16 %v69
  %v398 = vunpack.c.l.b16 %v70
  %v399 = vunpack.c.l.b16 %v71
  %v400 = vunpack.c.l.b16 %v72
  %v401 = vunpack.c.l.b16 %v73
  %v402 = vunpack.c.l.b16 %v74
  %v403 = vunpack.c.l.b16 %v75
  %v404 = vunpack.c.l.b16 %v76
  %v405 = vunpack.c.l.b16 %v77
  %v406 = vunpack.c.l.b16 %v78
  %v407 = vunpack.c.l.b16 %v79
  %v408 = vunpack.c.l.b16 %v80
  %v409 = vunpack.c.l.b16 %v81
  %v410 = vunpack.c.l.b16 %v82
  %v411 = vunpack.c.l.b16 %v83
  %v412 = vunpack.c.l.b16 %v84
  %v413 = vunpack.c.l.b16 %v85
  %v414 = vunpack.c.l.b16 %v86
  %v415 = vunpack.c.l.b16 %v87
  %v416 = vunpack.c.l.b16 %v88
  %v417 = vunpack.c.l.b16 %v89
  %v418 = vunpack.c.l.b16 %v90
  %v419 = vunpack.c.l.b16 %v91
  %v420 = vunpack.c.l.b16 %v92
  %v421 = vunpack.c.l.b16 %v93
  %v422 = vunpack.c.l.b16 %v94
  %v423 = vunpack.c.l.b16 %v95
  %v424 = vunpack.c.l.b16 %v96
  %v425 = vunpack.c.l.b16 %v97
  %v426 = vunpack.c.l.b16 %v98
  %v427 = vunpack.c.l.b16 %v99
  %v428 = vunpack.c.l.b16 %v100
  %v429 = vunpack.c.l.b16 %v101
  %v430 = vunpack.c.l.b16 %v102
  %v431 = vunpack.c.l.b16 %v103
  %v432 = vunpack.c.l.b16 %v104
  %v433 = vunpack.c.l.b16 %v105
  %v434 = vunpack.c.l.b16 %v106
  %v435 = vunpack.c.l.b16 %v107
  %v436 = vunpack.c.l.b16 %v108
  %v437 = vunpack.c.l.b16 %v109
  %v438 = vunpack.c.l.b16 %v110
  %v439 = vunpack.c.l.b16 %v111
  %v440 = vunpack.c.l.b16 %v112
  %v441 = vunpack.c.l.b16 %v113
  %v442 = vunpack.c.l.b16 %v114
  %v443 = vunpack.c.l.b16 %v115
  %v444 = vunpack.c.l.b16 %v116
  %v445 = vunpack.c.l.b16 %v117
  %v446 = vunpack.c.l.b16 %v118
  %v447 = vunpack.c.l.b16 %v119
  %v448 = vunpack.c.l.b16 %v120
  %v449 = vunpack.c.l.b16 %v121
  %v450 = vunpack.c.l.b16 %v122
  %v451 = vunpack.c.l.b16 %v123
  %v452 = vunpack.c.l.b16 %v124
  %v453 = vunpack.c.l.b16 %v125
  %v454 = vunpack.c.l.b16 %v126
  %v455 = vunpack.c.l.b16 %v127
  %v456 = vunpack.c.l.b16 %v128
  %v457 = vunpack.c.l.b16 %v129
  %v458 = vunpack.c.l.b16 %v130
  %v459 = vunpack.c.l.b16 %v131
  %v460 = vunpack.c.l.b16 %v132
  %v461 = vunpack.c.l.b16 %v133
  %v462 = vunpack.c.l.b16 %v134
  %v463 = vunpack.c.l.b16 %v135
  %v464 = vunpack.c.l.b16 %v136
  %v465 = vunpack.c.l.b16 %v137
  %v466 = vunpack.c.l.b16 %v138
  %v467 = vunpack.c.l.b16 %v139
  %v468 = vunpack.c.l.b16 %v140
  %v469 = vunpack.c.l.b16 %v141
  %v470 = vunpack.c.l.b16 %v142
  %v471 = vunpack.c.l.b16 %v143
  %v472 = vunpack.c.l.b16 %v144
  %v473 = vunpack.c.l.b16 %v145
  %v474 = vunpack.c.l.b16 %v146
  %v475 = vunpack.c.l.b16 %v147
  %v476 = vunpack.c.l.b16 %v148
  %v477 = vunpack.c.l.b16 %v149
  %v478 = vunpack.c.l.b16 %v150
  %v479 = vunpack.c.l.b16 %v151
  %v480 = vpack.c.b16 %v353, %v352
  %v481 = vpack.c.b16 %v355, %v354
  %v482 = vpack.c.b16 %v357, %v356
  %v483 = vpack.c.b16 %v359, %v358
  %v484 = vpack.c.b16 %v361, %v360
  %v485 = vpack.c.b16 %v363, %v362
  %v486 = vpack.c.b16 %v365, %v364
  %v487 = vpack.c.b16 %v367, %v366
  %v488 = vpack.c.b16 %v369, %v368
  %v489 = vpack.c.b16 %v371, %v370
  %v490 = vpack.c.b16 %v373, %v372
  %v491 = vpack.c.b16 %v375, %v374
  %v492 = vpack.c.b16 %v377, %v376
  %v493 = vpack.c.b16 %v379, %v378
  %v494 = vpack.c.b16 %v381, %v380
  %v495 = vpack.c.b16 %v383, %v382
  %v496 = vpack.c.b16 %v385, %v384
  %v497 = vpack.c.b16 %v387, %v386
  %v498 = vpack.c.b16 %v389, %v388
  %v499 = vpack.c.b16 %v391, %v390
  %v500 = vpack.c.b16 %v393, %v392
  %v501 = vpack.c.b16 %v395, %v394
  %v502 = vpack.c.b16 %v397, %v396
  %v503 = vpack.c.b16 %v399, %v398
  %v504 = vpack.c.b16 %v401, %v400
  %v505 = vpack.c.b16 %v403, %v402
  %v506 = vpack.c.b16 %v405, %v404
  %v507 = vpack.c.b16 %v407, %v406
  %v508 = vpack.c.b16 %v409, %v408
  %v509 = vpack.c.b16 %v411, %v410
  %v510 = vpack.c.b16 %v413, %v412
  %v511 = vpack.c.b16 %v415, %v414
  %v512 = vpack.c.b16 %v417, %v416
  %v513 = vpack.c.b16 %v419, %v418
  %v514 = vpack.c.b16 %v421, %v420
  %v515 = vpack.c.b16 %v423, %v422
  %v516 = vpack.c.b16 %v425, %v424
  %v517 = vpack.c.b16 %v427, %v426
  %v518 = vpack.c.b16 %v429, %v428
  %v519 = vpack.c.b16 %v431, %v430
  %v520 = vpack.c.b16 %v433, %v432
  %v521 = vpack.c.b16 %v435, %v434
  %v522 = vpack.c.b16 %v437, %v436
  %v523 = vpack.c.b16 %v439, %v438
  %v524 = vpack.c.b16 %v441, %v440
  %v525 = vpack.c.b16 %v443, %v442
  %v526 = vpack.c.b16 %v445, %v444
  %v527 = vpack.c.b16 %v447, %v446
  %v528 = vpack.c.b16 %v449, %v448
  %v529 = vpack.c.b16 %v451, %v450
  %v530 = vpack.c.b16 %v453, %v452
  %v531 = vpack.c.b16 %v455, %v454
  %v532 = vpack.c.b16 %v457, %v456
  %v533 = vpack.c.b16 %v459, %v458
  %v534 = vpack.c.b16 %v461, %v460
  %v535 = vpack.c.b16 %v463, %v462
  %v536 = vpack.c.b16 %v465, %v464
  %v537 = vpack.c.b16 %v467, %v466
  %v538 = vpack.c.b16 %v469, %v468
  %v539 = vpack.c.b16 %v471, %v470
  %v540 = vpack.c.b16 %v473, %v472
  %v541 = vpack.c.b16 %v475, %v474
  %v542 = vpack.c.b16 %v477, %v476
  %v543 = vpack.c.b16 %v479, %v478
  %608 = vmatprep.subr.bf16.mxu0 0
  %609 = vmatpush1.bf16.msra.mxu0 %v480
  %610 = vmatprep.subr.bf16.mxu0 0
  %611 = vmatpush1.bf16.msra.mxu0 %v481
  %612 = vmatprep.subr.bf16.mxu0 0
  %613 = vmatpush1.bf16.msra.mxu0 %v482
  %614 = vmatprep.subr.bf16.mxu0 0
  %615 = vmatpush1.bf16.msra.mxu0 %v483
  %616 = vmatprep.subr.bf16.mxu0 0
  %617 = vmatpush1.bf16.msra.mxu0 %v484
  %618 = vmatprep.subr.bf16.mxu0 0
  %619 = vmatpush1.bf16.msra.mxu0 %v485
  %620 = vmatprep.subr.bf16.mxu0 0
  %621 = vmatpush1.bf16.msra.mxu0 %v486
  %622 = vmatprep.subr.bf16.mxu0 0
  %623 = vmatpush1.bf16.msra.mxu0 %v487
  %624 = vmatprep.subr.bf16.mxu0 0
  %625 = vmatpush1.bf16.msra.mxu0 %v488
  %626 = vmatprep.subr.bf16.mxu0 0
  %627 = vmatpush1.bf16.msra.mxu0 %v489
  %628 = vmatprep.subr.bf16.mxu0 0
  %629 = vmatpush1.bf16.msra.mxu0 %v490
  %630 = vmatprep.subr.bf16.mxu0 0
  %631 = vmatpush1.bf16.msra.mxu0 %v491
  %632 = vmatprep.subr.bf16.mxu0 0
  %633 = vmatpush1.bf16.msra.mxu0 %v492
  %634 = vmatprep.subr.bf16.mxu0 0
  %635 = vmatpush1.bf16.msra.mxu0 %v493
  %636 = vmatprep.subr.bf16.mxu0 0
  %637 = vmatpush1.bf16.msra.mxu0 %v494
  %638 = vmatprep.subr.bf16.mxu0 0
  %639 = vmatpush1.bf16.msra.mxu0 %v495
  %640 = vmatprep.mubr.bf16.mxu0 %v211
  %641 = vmatmul.mubr.bf16.gmra.mrb[0].mxu0 %v210
  %v642 = vpop.f32.mrb[0].mxu0
  %v643 = vadd.f32 %v222, %v642
  %v644 = vpop.f32.mrb[0].mxu0
  %v645 = vpop.f32.mrb[0].mxu0
  %v646 = vpop.f32.mrb[0].mxu0
  %647 = vdwg.mxu0
  %648 = vmatprep.subr.bf16.mxu0 0
  %649 = vmatpush1.bf16.msra.mxu0 %v496
  %650 = vmatprep.subr.bf16.mxu0 0
  %651 = vmatpush1.bf16.msra.mxu0 %v497
  %652 = vmatprep.subr.bf16.mxu0 0
  %653 = vmatpush1.bf16.msra.mxu0 %v498
  %654 = vmatprep.subr.bf16.mxu0 0
  %655 = vmatpush1.bf16.msra.mxu0 %v499
  %656 = vmatprep.subr.bf16.mxu0 0
  %657 = vmatpush1.bf16.msra.mxu0 %v500
  %658 = vmatprep.subr.bf16.mxu0 0
  %659 = vmatpush1.bf16.msra.mxu0 %v501
  %660 = vmatprep.subr.bf16.mxu0 0
  %661 = vmatpush1.bf16.msra.mxu0 %v502
  %662 = vmatprep.subr.bf16.mxu0 0
  %663 = vmatpush1.bf16.msra.mxu0 %v503
  %664 = vmatprep.subr.bf16.mxu0 0
  %665 = vmatpush1.bf16.msra.mxu0 %v504
  %666 = vmatprep.subr.bf16.mxu0 0
  %667 = vmatpush1.bf16.msra.mxu0 %v505
  %668 = vmatprep.subr.bf16.mxu0 0
  %669 = vmatpush1.bf16.msra.mxu0 %v506
  %670 = vmatprep.subr.bf16.mxu0 0
  %671 = vmatpush1.bf16.msra.mxu0 %v507
  %672 = vmatprep.subr.bf16.mxu0 0
  %673 = vmatpush1.bf16.msra.mxu0 %v508
  %674 = vmatprep.subr.bf16.mxu0 0
  %675 = vmatpush1.bf16.msra.mxu0 %v509
  %676 = vmatprep.subr.bf16.mxu0 0
  %677 = vmatpush1.bf16.msra.mxu0 %v510
  %678 = vmatprep.subr.bf16.mxu0 0
  %679 = vmatpush1.bf16.msra.mxu0 %v511
  %680 = vmatprep.mubr.bf16.mxu0 %v213
  %681 = vmatmul.mubr.bf16.gmra.mrb[0].mxu0 %v212
  %v682 = vpop.f32.mrb[0].mxu0
  %v683 = vadd.f32 %v643, %v682
  %v684 = vpop.f32.mrb[0].mxu0
  %v685 = vpop.f32.mrb[0].mxu0
  %v686 = vpop.f32.mrb[0].mxu0
  %687 = vdwg.mxu0
  %688 = vmatprep.subr.bf16.mxu0 0
  %689 = vmatpush1.bf16.msra.mxu0 %v512
  %690 = vmatprep.subr.bf16.mxu0 0
  %691 = vmatpush1.bf16.msra.mxu0 %v513
  %692 = vmatprep.subr.bf16.mxu0 0
  %693 = vmatpush1.bf16.msra.mxu0 %v514
  %694 = vmatprep.subr.bf16.mxu0 0
  %695 = vmatpush1.bf16.msra.mxu0 %v515
  %696 = vmatprep.subr.bf16.mxu0 0
  %697 = vmatpush1.bf16.msra.mxu0 %v516
  %698 = vmatprep.subr.bf16.mxu0 0
  %699 = vmatpush1.bf16.msra.mxu0 %v517
  %700 = vmatprep.subr.bf16.mxu0 0
  %701 = vmatpush1.bf16.msra.mxu0 %v518
  %702 = vmatprep.subr.bf16.mxu0 0
  %703 = vmatpush1.bf16.msra.mxu0 %v519
  %704 = vmatprep.subr.bf16.mxu0 0
  %705 = vmatpush1.bf16.msra.mxu0 %v520
  %706 = vmatprep.subr.bf16.mxu0 0
  %707 = vmatpush1.bf16.msra.mxu0 %v521
  %708 = vmatprep.subr.bf16.mxu0 0
  %709 = vmatpush1.bf16.msra.mxu0 %v522
  %710 = vmatprep.subr.bf16.mxu0 0
  %711 = vmatpush1.bf16.msra.mxu0 %v523
  %712 = vmatprep.subr.bf16.mxu0 0
  %713 = vmatpush1.bf16.msra.mxu0 %v524
  %714 = vmatprep.subr.bf16.mxu0 0
  %715 = vmatpush1.bf16.msra.mxu0 %v525
  %716 = vmatprep.subr.bf16.mxu0 0
  %717 = vmatpush1.bf16.msra.mxu0 %v526
  %718 = vmatprep.subr.bf16.mxu0 0
  %719 = vmatpush1.bf16.msra.mxu0 %v527
  %720 = vmatprep.mubr.bf16.mxu0 %v215
  %721 = vmatmul.mubr.bf16.gmra.mrb[0].mxu0 %v214
  %v722 = vpop.f32.mrb[0].mxu0
  %v723 = vadd.f32 %v683, %v722
  %v724 = vpop.f32.mrb[0].mxu0
  %v725 = vpop.f32.mrb[0].mxu0
  %v726 = vpop.f32.mrb[0].mxu0
  %727 = vdwg.mxu0
  %728 = vmatprep.subr.bf16.mxu0 0
  %729 = vmatpush1.bf16.msra.mxu0 %v528
  %730 = vmatprep.subr.bf16.mxu0 0
  %731 = vmatpush1.bf16.msra.mxu0 %v529
  %732 = vmatprep.subr.bf16.mxu0 0
  %733 = vmatpush1.bf16.msra.mxu0 %v530
  %734 = vmatprep.subr.bf16.mxu0 0
  %735 = vmatpush1.bf16.msra.mxu0 %v531
  %736 = vmatprep.subr.bf16.mxu0 0
  %737 = vmatpush1.bf16.msra.mxu0 %v532
  %738 = vmatprep.subr.bf16.mxu0 0
  %739 = vmatpush1.bf16.msra.mxu0 %v533
  %740 = vmatprep.subr.bf16.mxu0 0
  %741 = vmatpush1.bf16.msra.mxu0 %v534
  %742 = vmatprep.subr.bf16.mxu0 0
  %743 = vmatpush1.bf16.msra.mxu0 %v535
  %744 = vmatprep.subr.bf16.mxu0 0
  %745 = vmatpush1.bf16.msra.mxu0 %v536
  %746 = vmatprep.subr.bf16.mxu0 0
  %747 = vmatpush1.bf16.msra.mxu0 %v537
  %748 = vmatprep.subr.bf16.mxu0 0
  %749 = vmatpush1.bf16.msra.mxu0 %v538
  %750 = vmatprep.subr.bf16.mxu0 0
  %751 = vmatpush1.bf16.msra.mxu0 %v539
  %752 = vmatprep.subr.bf16.mxu0 0
  %753 = vmatpush1.bf16.msra.mxu0 %v540
  %754 = vmatprep.subr.bf16.mxu0 0
  %755 = vmatpush1.bf16.msra.mxu0 %v541
  %756 = vmatprep.subr.bf16.mxu0 0
  %757 = vmatpush1.bf16.msra.mxu0 %v542
  %758 = vmatprep.subr.bf16.mxu0 0
  %759 = vmatpush1.bf16.msra.mxu0 %v543
  %760 = vmatprep.mubr.bf16.mxu0 %v217
  %761 = vmatmul.mubr.bf16.gmra.mrb[0].mxu0 %v216
  %v762 = vpop.f32.mrb[0].mxu0
  %v763 = vadd.f32 %v723, %v762
  %v764 = vpop.f32.mrb[0].mxu0
  %v765 = vpop.f32.mrb[0].mxu0
  %v766 = vpop.f32.mrb[0].mxu0
  %767 = vdwg.mxu0
  %v768 = vmax.f32 %v763, 0.0
  %v769 = vpack.c.bf16 %v768, %v768
  %v771 = vlaneseq
  %v772 = vshrl.u32 %v771, 7
  %v773 = vsub.s32 0, %v772
  %v774 = vrot.slane %v157, %v773
  %v775 = vlaneseq
  %v776 = vshrl.u32 %v775, 7
  %v777 = vsub.s32 1, %v776
  %v778 = vrot.slane %v157, %v777
  %v785 = vunpack.c.l.b16 %v153
  %v786 = vunpack.c.h.b16 %v153
  %v787 = vunpack.c.l.b16 %v154
  %v788 = vunpack.c.h.b16 %v154
  %v789 = vunpack.c.l.b16 %v155
  %v790 = vunpack.c.h.b16 %v155
  %v791 = vunpack.c.l.b16 %v156
  %v792 = vunpack.c.h.b16 %v156
  %v793 = vpack.c.b16 %v787, %v785
  %v794 = vpack.c.b16 %v788, %v786
  %v795 = vpack.c.b16 %v791, %v789
  %v796 = vpack.c.b16 %v792, %v790
  %vm801 = vcmask 261120
  %v803 = vsel %vm801, %v769, 0
  %805 = vmatprep.subr.bf16.mxu0 %v794
  %806 = vmatpush1.bf16.msra.mxu0 %v793
  %807 = vmatprep.subr.bf16.mxu0 %v796
  %808 = vmatpush1.bf16.msra.mxu0 %v795
  %809 = vmatprep.subr.bf16.mxu0 0
  %810 = vmatpush1.bf16.msra.mxu0 0
  %811 = vmatprep.subr.bf16.mxu0 0
  %812 = vmatpush1.bf16.msra.mxu0 0
  %813 = vmatprep.subr.bf16.mxu0 0
  %814 = vmatpush1.bf16.msra.mxu0 0
  %815 = vmatprep.subr.bf16.mxu0 0
  %816 = vmatpush1.bf16.msra.mxu0 0
  %817 = vmatprep.subr.bf16.mxu0 0
  %818 = vmatpush1.bf16.msra.mxu0 0
  %819 = vmatprep.subr.bf16.mxu0 0
  %820 = vmatpush1.bf16.msra.mxu0 0
  %821 = vmatprep.subr.bf16.mxu0 0
  %822 = vmatpush1.bf16.msra.mxu0 0
  %823 = vmatprep.subr.bf16.mxu0 0
  %824 = vmatpush1.bf16.msra.mxu0 0
  %825 = vmatprep.subr.bf16.mxu0 0
  %826 = vmatpush1.bf16.msra.mxu0 0
  %827 = vmatprep.subr.bf16.mxu0 0
  %828 = vmatpush1.bf16.msra.mxu0 0
  %829 = vmatprep.subr.bf16.mxu0 0
  %830 = vmatpush1.bf16.msra.mxu0 0
  %831 = vmatprep.subr.bf16.mxu0 0
  %832 = vmatpush1.bf16.msra.mxu0 0
  %833 = vmatprep.subr.bf16.mxu0 0
  %834 = vmatpush1.bf16.msra.mxu0 0
  %835 = vmatprep.subr.bf16.mxu0 0
  %836 = vmatpush1.bf16.msra.mxu0 0
  %837 = vmatprep.mubr.bf16.mxu0 0
  %838 = vmatmul.mubr.bf16.gmra.mrb[0].mxu0 %v803
  %v839 = vpop.f32.mrb[0].mxu0
  %v840 = vadd.f32 %v774, %v839
  %v841 = vpop.f32.mrb[0].mxu0
  %v842 = vadd.f32 %v778, %v841
  %v843 = vpop.f32.mrb[0].mxu0
  %v844 = vpop.f32.mrb[0].mxu0
  %845 = vdwg.mxu0
  %v846 = vmul.f32 %v842, %v842
  %vm847 = vcmask 1041408
  %v848 = vsel %vm847, %v846, 0.0
  %849 = vadd.xlane.f32.xlu0 %v848
  %v850 = vpop.xlane.xlu0 %849
  %v851 = vmul.f32 %v840, %v840
  %v852 = vsel %vm847, %v851, 0.0
  %853 = vadd.xlane.f32.xlu0 %v852
  %v854 = vpop.xlane.xlu0 %853
  %v855 = vmul.f32 %v842, %v840
  %v856 = vsel %vm847, %v855, 0.0
  %857 = vadd.xlane.f32.xlu0 %v856
  %v858 = vpop.xlane.xlu0 %857
  %v859 = vrsqrt.pop %v850
  %v860 = vmin.f32 %v859, 1e+12
  %v861 = vrsqrt.pop %v854
  %v862 = vmin.f32 %v861, 1e+12
  %v863 = vmul.f32 %v858, %v860
  %v864 = vmul.f32 %v863, %v862
  %v865 = vmul.f32 %v864, 2.0
  %v866 = vsub.f32 2.0, %v865
  %v867 = vsel %vm163, %v866, 0.0
  %v868 = vld [vmem:[%s1] sm:$0xff]
  %v869 = vld [vmem:[%s1 + $0x8] sm:$0xff]
  %v872 = vcombine.high %v868, %v868
  %v874 = vunpack.c.l.s4 1983009808
  %v875 = vunpack.c.0.s8 %v874
  %v876 = vlaneseq
  %v877 = vshrl.u32 %v876, 7
  %v878 = vsub.s32 %v875, %v877
  %v879 = vrot.slane %v868, %v878
  %v881 = vunpack.c.l.s4 1983009808
  %v882 = vunpack.c.0.s8 %v881
  %v883 = vlaneseq
  %v884 = vshrl.u32 %v883, 7
  %v885 = vsub.s32 %v882, %v884
  %v886 = vrot.slane %v872, %v885
  %v887 = vcombine.high %v879, %v879
  %v888 = vcombine.high %v886, %v886
  %v889 = vcombine.high %v869, %v869
  %v891 = vunpack.c.l.s4 1983009808
  %v892 = vunpack.c.0.s8 %v891
  %v893 = vlaneseq
  %v894 = vshrl.u32 %v893, 7
  %v895 = vsub.s32 %v892, %v894
  %v896 = vrot.slane %v869, %v895
  %v898 = vunpack.c.l.s4 1983009808
  %v899 = vunpack.c.0.s8 %v898
  %v900 = vlaneseq
  %v901 = vshrl.u32 %v900, 7
  %v902 = vsub.s32 %v899, %v901
  %v903 = vrot.slane %v889, %v902
  %v904 = vcombine.high %v896, %v896
  %v905 = vcombine.high %v903, %v903
  %v914 = vpack.c.bf16 %v879, %v879
  %v915 = vpack.c.bf16 %v887, %v887
  %v916 = vpack.c.bf16 %v886, %v886
  %v917 = vpack.c.bf16 %v888, %v888
  %v918 = vpack.c.bf16 %v896, %v896
  %v919 = vpack.c.bf16 %v904, %v904
  %v920 = vpack.c.bf16 %v903, %v903
  %v921 = vpack.c.bf16 %v905, %v905
  %922 = vmatprep.subr.bf16.mxu0 0
  %923 = vmatpush1.bf16.msra.mxu0 %v480
  %924 = vmatprep.subr.bf16.mxu0 0
  %925 = vmatpush1.bf16.msra.mxu0 %v481
  %926 = vmatprep.subr.bf16.mxu0 0
  %927 = vmatpush1.bf16.msra.mxu0 %v482
  %928 = vmatprep.subr.bf16.mxu0 0
  %929 = vmatpush1.bf16.msra.mxu0 %v483
  %930 = vmatprep.subr.bf16.mxu0 0
  %931 = vmatpush1.bf16.msra.mxu0 %v484
  %932 = vmatprep.subr.bf16.mxu0 0
  %933 = vmatpush1.bf16.msra.mxu0 %v485
  %934 = vmatprep.subr.bf16.mxu0 0
  %935 = vmatpush1.bf16.msra.mxu0 %v486
  %936 = vmatprep.subr.bf16.mxu0 0
  %937 = vmatpush1.bf16.msra.mxu0 %v487
  %938 = vmatprep.subr.bf16.mxu0 0
  %939 = vmatpush1.bf16.msra.mxu0 %v488
  %940 = vmatprep.subr.bf16.mxu0 0
  %941 = vmatpush1.bf16.msra.mxu0 %v489
  %942 = vmatprep.subr.bf16.mxu0 0
  %943 = vmatpush1.bf16.msra.mxu0 %v490
  %944 = vmatprep.subr.bf16.mxu0 0
  %945 = vmatpush1.bf16.msra.mxu0 %v491
  %946 = vmatprep.subr.bf16.mxu0 0
  %947 = vmatpush1.bf16.msra.mxu0 %v492
  %948 = vmatprep.subr.bf16.mxu0 0
  %949 = vmatpush1.bf16.msra.mxu0 %v493
  %950 = vmatprep.subr.bf16.mxu0 0
  %951 = vmatpush1.bf16.msra.mxu0 %v494
  %952 = vmatprep.subr.bf16.mxu0 0
  %953 = vmatpush1.bf16.msra.mxu0 %v495
  %954 = vmatprep.mubr.bf16.mxu0 %v915
  %955 = vmatmul.mubr.bf16.gmra.mrb[0].mxu0 %v914
  %v956 = vpop.f32.mrb[0].mxu0
  %v957 = vadd.f32 %v222, %v956
  %v958 = vpop.f32.mrb[0].mxu0
  %v959 = vpop.f32.mrb[0].mxu0
  %v960 = vpop.f32.mrb[0].mxu0
  %961 = vdwg.mxu0
  %962 = vmatprep.subr.bf16.mxu0 0
  %963 = vmatpush1.bf16.msra.mxu0 %v496
  %964 = vmatprep.subr.bf16.mxu0 0
  %965 = vmatpush1.bf16.msra.mxu0 %v497
  %966 = vmatprep.subr.bf16.mxu0 0
  %967 = vmatpush1.bf16.msra.mxu0 %v498
  %968 = vmatprep.subr.bf16.mxu0 0
  %969 = vmatpush1.bf16.msra.mxu0 %v499
  %970 = vmatprep.subr.bf16.mxu0 0
  %971 = vmatpush1.bf16.msra.mxu0 %v500
  %972 = vmatprep.subr.bf16.mxu0 0
  %973 = vmatpush1.bf16.msra.mxu0 %v501
  %974 = vmatprep.subr.bf16.mxu0 0
  %975 = vmatpush1.bf16.msra.mxu0 %v502
  %976 = vmatprep.subr.bf16.mxu0 0
  %977 = vmatpush1.bf16.msra.mxu0 %v503
  %978 = vmatprep.subr.bf16.mxu0 0
  %979 = vmatpush1.bf16.msra.mxu0 %v504
  %980 = vmatprep.subr.bf16.mxu0 0
  %981 = vmatpush1.bf16.msra.mxu0 %v505
  %982 = vmatprep.subr.bf16.mxu0 0
  %983 = vmatpush1.bf16.msra.mxu0 %v506
  %984 = vmatprep.subr.bf16.mxu0 0
  %985 = vmatpush1.bf16.msra.mxu0 %v507
  %986 = vmatprep.subr.bf16.mxu0 0
  %987 = vmatpush1.bf16.msra.mxu0 %v508
  %988 = vmatprep.subr.bf16.mxu0 0
  %989 = vmatpush1.bf16.msra.mxu0 %v509
  %990 = vmatprep.subr.bf16.mxu0 0
  %991 = vmatpush1.bf16.msra.mxu0 %v510
  %992 = vmatprep.subr.bf16.mxu0 0
  %993 = vmatpush1.bf16.msra.mxu0 %v511
  %994 = vmatprep.mubr.bf16.mxu0 %v917
  %995 = vmatmul.mubr.bf16.gmra.mrb[0].mxu0 %v916
  %v996 = vpop.f32.mrb[0].mxu0
  %v997 = vadd.f32 %v957, %v996
  %v998 = vpop.f32.mrb[0].mxu0
  %v999 = vpop.f32.mrb[0].mxu0
  %v1000 = vpop.f32.mrb[0].mxu0
  %1001 = vdwg.mxu0
  %1002 = vmatprep.subr.bf16.mxu0 0
  %1003 = vmatpush1.bf16.msra.mxu0 %v512
  %1004 = vmatprep.subr.bf16.mxu0 0
  %1005 = vmatpush1.bf16.msra.mxu0 %v513
  %1006 = vmatprep.subr.bf16.mxu0 0
  %1007 = vmatpush1.bf16.msra.mxu0 %v514
  %1008 = vmatprep.subr.bf16.mxu0 0
  %1009 = vmatpush1.bf16.msra.mxu0 %v515
  %1010 = vmatprep.subr.bf16.mxu0 0
  %1011 = vmatpush1.bf16.msra.mxu0 %v516
  %1012 = vmatprep.subr.bf16.mxu0 0
  %1013 = vmatpush1.bf16.msra.mxu0 %v517
  %1014 = vmatprep.subr.bf16.mxu0 0
  %1015 = vmatpush1.bf16.msra.mxu0 %v518
  %1016 = vmatprep.subr.bf16.mxu0 0
  %1017 = vmatpush1.bf16.msra.mxu0 %v519
  %1018 = vmatprep.subr.bf16.mxu0 0
  %1019 = vmatpush1.bf16.msra.mxu0 %v520
  %1020 = vmatprep.subr.bf16.mxu0 0
  %1021 = vmatpush1.bf16.msra.mxu0 %v521
  %1022 = vmatprep.subr.bf16.mxu0 0
  %1023 = vmatpush1.bf16.msra.mxu0 %v522
  %1024 = vmatprep.subr.bf16.mxu0 0
  %1025 = vmatpush1.bf16.msra.mxu0 %v523
  %1026 = vmatprep.subr.bf16.mxu0 0
  %1027 = vmatpush1.bf16.msra.mxu0 %v524
  %1028 = vmatprep.subr.bf16.mxu0 0
  %1029 = vmatpush1.bf16.msra.mxu0 %v525
  %1030 = vmatprep.subr.bf16.mxu0 0
  %1031 = vmatpush1.bf16.msra.mxu0 %v526
  %1032 = vmatprep.subr.bf16.mxu0 0
  %1033 = vmatpush1.bf16.msra.mxu0 %v527
  %1034 = vmatprep.mubr.bf16.mxu0 %v919
  %1035 = vmatmul.mubr.bf16.gmra.mrb[0].mxu0 %v918
  %v1036 = vpop.f32.mrb[0].mxu0
  %v1037 = vadd.f32 %v997, %v1036
  %v1038 = vpop.f32.mrb[0].mxu0
  %v1039 = vpop.f32.mrb[0].mxu0
  %v1040 = vpop.f32.mrb[0].mxu0
  %1041 = vdwg.mxu0
  %1042 = vmatprep.subr.bf16.mxu0 0
  %1043 = vmatpush1.bf16.msra.mxu0 %v528
  %1044 = vmatprep.subr.bf16.mxu0 0
  %1045 = vmatpush1.bf16.msra.mxu0 %v529
  %1046 = vmatprep.subr.bf16.mxu0 0
  %1047 = vmatpush1.bf16.msra.mxu0 %v530
  %1048 = vmatprep.subr.bf16.mxu0 0
  %1049 = vmatpush1.bf16.msra.mxu0 %v531
  %1050 = vmatprep.subr.bf16.mxu0 0
  %1051 = vmatpush1.bf16.msra.mxu0 %v532
  %1052 = vmatprep.subr.bf16.mxu0 0
  %1053 = vmatpush1.bf16.msra.mxu0 %v533
  %1054 = vmatprep.subr.bf16.mxu0 0
  %1055 = vmatpush1.bf16.msra.mxu0 %v534
  %1056 = vmatprep.subr.bf16.mxu0 0
  %1057 = vmatpush1.bf16.msra.mxu0 %v535
  %1058 = vmatprep.subr.bf16.mxu0 0
  %1059 = vmatpush1.bf16.msra.mxu0 %v536
  %1060 = vmatprep.subr.bf16.mxu0 0
  %1061 = vmatpush1.bf16.msra.mxu0 %v537
  %1062 = vmatprep.subr.bf16.mxu0 0
  %1063 = vmatpush1.bf16.msra.mxu0 %v538
  %1064 = vmatprep.subr.bf16.mxu0 0
  %1065 = vmatpush1.bf16.msra.mxu0 %v539
  %1066 = vmatprep.subr.bf16.mxu0 0
  %1067 = vmatpush1.bf16.msra.mxu0 %v540
  %1068 = vmatprep.subr.bf16.mxu0 0
  %1069 = vmatpush1.bf16.msra.mxu0 %v541
  %1070 = vmatprep.subr.bf16.mxu0 0
  %1071 = vmatpush1.bf16.msra.mxu0 %v542
  %1072 = vmatprep.subr.bf16.mxu0 0
  %1073 = vmatpush1.bf16.msra.mxu0 %v543
  %1074 = vmatprep.mubr.bf16.mxu0 %v921
  %1075 = vmatmul.mubr.bf16.gmra.mrb[0].mxu0 %v920
  %v1076 = vpop.f32.mrb[0].mxu0
  %v1077 = vadd.f32 %v1037, %v1076
  %v1078 = vpop.f32.mrb[0].mxu0
  %v1079 = vpop.f32.mrb[0].mxu0
  %v1080 = vpop.f32.mrb[0].mxu0
  %1081 = vdwg.mxu0
  %v1082 = vmax.f32 %v1077, 0.0
  %v1083 = vpack.c.bf16 %v1082, %v1082
  %v1085 = vsel %vm801, %v1083, 0
  %1087 = vmatprep.subr.bf16.mxu0 %v794
  %1088 = vmatpush1.bf16.msra.mxu0 %v793
  %1089 = vmatprep.subr.bf16.mxu0 %v796
  %1090 = vmatpush1.bf16.msra.mxu0 %v795
  %1091 = vmatprep.subr.bf16.mxu0 0
  %1092 = vmatpush1.bf16.msra.mxu0 0
  %1093 = vmatprep.subr.bf16.mxu0 0
  %1094 = vmatpush1.bf16.msra.mxu0 0
  %1095 = vmatprep.subr.bf16.mxu0 0
  %1096 = vmatpush1.bf16.msra.mxu0 0
  %1097 = vmatprep.subr.bf16.mxu0 0
  %1098 = vmatpush1.bf16.msra.mxu0 0
  %1099 = vmatprep.subr.bf16.mxu0 0
  %1100 = vmatpush1.bf16.msra.mxu0 0
  %1101 = vmatprep.subr.bf16.mxu0 0
  %1102 = vmatpush1.bf16.msra.mxu0 0
  %1103 = vmatprep.subr.bf16.mxu0 0
  %1104 = vmatpush1.bf16.msra.mxu0 0
  %1105 = vmatprep.subr.bf16.mxu0 0
  %1106 = vmatpush1.bf16.msra.mxu0 0
  %1107 = vmatprep.subr.bf16.mxu0 0
  %1108 = vmatpush1.bf16.msra.mxu0 0
  %1109 = vmatprep.subr.bf16.mxu0 0
  %1110 = vmatpush1.bf16.msra.mxu0 0
  %1111 = vmatprep.subr.bf16.mxu0 0
  %1112 = vmatpush1.bf16.msra.mxu0 0
  %1113 = vmatprep.subr.bf16.mxu0 0
  %1114 = vmatpush1.bf16.msra.mxu0 0
  %1115 = vmatprep.subr.bf16.mxu0 0
  %1116 = vmatpush1.bf16.msra.mxu0 0
  %1117 = vmatprep.subr.bf16.mxu0 0
  %1118 = vmatpush1.bf16.msra.mxu0 0
  %1119 = vmatprep.mubr.bf16.mxu0 0
  %1120 = vmatmul.mubr.bf16.gmra.mrb[0].mxu0 %v1085
  %v1121 = vpop.f32.mrb[0].mxu0
  %v1122 = vadd.f32 %v774, %v1121
  %v1123 = vpop.f32.mrb[0].mxu0
  %v1124 = vadd.f32 %v778, %v1123
  %v1125 = vpop.f32.mrb[0].mxu0
  %v1126 = vpop.f32.mrb[0].mxu0
  %1127 = vdwg.mxu0
  %v1128 = vmul.f32 %v1124, %v1124
  %v1129 = vsel %vm847, %v1128, 0.0
  %1130 = vadd.xlane.f32.xlu0 %v1129
  %v1131 = vpop.xlane.xlu0 %1130
  %v1132 = vmul.f32 %v1122, %v1122
  %v1133 = vsel %vm847, %v1132, 0.0
  %1134 = vadd.xlane.f32.xlu0 %v1133
  %v1135 = vpop.xlane.xlu0 %1134
  %v1136 = vmul.f32 %v1124, %v1122
  %v1137 = vsel %vm847, %v1136, 0.0
  %1138 = vadd.xlane.f32.xlu0 %v1137
  %v1139 = vpop.xlane.xlu0 %1138
  %v1140 = vrsqrt.pop %v1131
  %v1141 = vmin.f32 %v1140, 1e+12
  %v1142 = vrsqrt.pop %v1135
  %v1143 = vmin.f32 %v1142, 1e+12
  %v1144 = vmul.f32 %v1139, %v1141
  %v1145 = vmul.f32 %v1144, %v1143
  %v1146 = vmul.f32 %v1145, 2.0
  %v1147 = vsub.f32 2.0, %v1146
  %v1148 = vsel %vm163, %v1147, 0.0
  %v1149 = vsel %vm847, %v867, 0.0
  %v1150 = vrot.slane %v1149, 4
  %v1151 = vadd.f32 %v1149, %v1150
  %v1152 = vrot.slane %v1151, 2
  %v1153 = vadd.f32 %v1151, %v1152
  %v1154 = vrot.slane %v1153, 1
  %v1155 = vadd.f32 %v1153, %v1154
  %v1156 = vsel %vm847, %v1148, 0.0
  %v1157 = vrot.slane %v1156, 4
  %v1158 = vadd.f32 %v1156, %v1157
  %v1159 = vrot.slane %v1158, 2
  %v1160 = vadd.f32 %v1158, %v1159
  %v1161 = vrot.slane %v1160, 1
  %v1162 = vadd.f32 %v1160, %v1161
  %v1163 = vlaneseq
  %v1164 = vand.u32 %v1163, 127
  %vm1165 = vcmp.eq.s32.totalorder %v160, 0
  %vm1166 = vcmp.eq.s32.totalorder %v1164, 0
  %vm1167 = vmand %vm1165, %vm1166
  %vm1168 = vcmp.eq.s32.totalorder %v160, 1
  %vm1169 = vmand %vm1168, %vm1166
  %v1170 = vsel %vm1169, %v1162, 0.0
  %v1171 = vsel %vm1167, %v1155, %v1170
  %1172 = vst [vmem:[%s6] sm:$0xff] %v1171
  // Predicated region
  $region26: #{byol_forward.1} parent=0 // pred_check
    _
  $region27: #{byol_forward.1} parent=0 // pred_check_branch
    %1174 = sbr.rel (0) target = $region29
  $region28: #{byol_forward.1} parent=0 // pred_region
    _
  $region29: #{byol_forward.1} parent=0 // pred_fallthru
    _
  // Predicated region
  $region30: #{byol_forward.1} parent=0 // pred_check
    _
  $region31: #{byol_forward.1} parent=0 // pred_check_branch
    %1176 = sbr.rel (0) target = $region33
  $region32: #{byol_forward.1} parent=0 // pred_region
    _
  $region33: #{byol_forward.1} parent=0 // pred_fallthru
    _

// kernel: byol_forward.1
$region0: #{byol_forward.1}
  #allocation0 [shape = 'u32[]', space=smem, size = 0x4, offset = 0x4, fixed_abs, tag = 'smem constant byte address 0x4 - core index']
  #allocation1 [shape = 'u32[144,128]{1,0:T(1,128)}', space=vmem, size = 0x12000, scoped, tag = 'internal scratch']
  %s0 = inlined_call_operand.vmem [shape: f32[2,1024], index: 0, kind: input, shape index: {}]
  %s1 = inlined_call_operand.vmem [shape: f32[2,1024], index: 1, kind: input, shape index: {}]
  %s2 = inlined_call_operand.vmem [shape: bf16[1024,32], index: 2, kind: input, shape index: {}]
  %s3 = inlined_call_operand.vmem [shape: f32[1,32], index: 3, kind: input, shape index: {}]
  %s4 = inlined_call_operand.vmem [shape: bf16[32,256], index: 4, kind: input, shape index: {}]
  %s5 = inlined_call_operand.vmem [shape: f32[1,256], index: 5, kind: input, shape index: {}]
  %s6 = inlined_call_operand.vmem [shape: f32[8,128], index: 6, kind: output, shape index: {}]
  %s7 = sld [smem:[#allocation0]]
  $region34: #{byol_forward.1} parent=0
    _
  %s9 = ssub.s32 1, %s7
  %s10 = scalar_select 0, %s9, %s7
  // Predicated region
  $region2: #{byol_forward.1} parent=0 // pred_check
    _
  $region3: #{byol_forward.1} parent=0 // pred_check_branch
    %12 = sbr.rel (0) target = $region5
  $region4: #{byol_forward.1} parent=0 // pred_region
    _
  $region5: #{byol_forward.1} parent=0 // pred_fallthru
    _
  // Predicated region
  $region6: #{byol_forward.1} parent=0 // pred_check
    _
  $region7: #{byol_forward.1} parent=0 // pred_check_branch
    %14 = sbr.rel (0) target = $region9
  $region8: #{byol_forward.1} parent=0 // pred_region
    _
  $region9: #{byol_forward.1} parent=0 // pred_fallthru
    _
  // Predicated region
  $region10: #{byol_forward.1} parent=0 // pred_check
    _
  $region11: #{byol_forward.1} parent=0 // pred_check_branch
    %16 = sbr.rel (0) target = $region13
  $region12: #{byol_forward.1} parent=0 // pred_region
    _
  $region13: #{byol_forward.1} parent=0 // pred_fallthru
    _
  // Predicated region
  $region14: #{byol_forward.1} parent=0 // pred_check
    _
  $region15: #{byol_forward.1} parent=0 // pred_check_branch
    %18 = sbr.rel (0) target = $region17
  $region16: #{byol_forward.1} parent=0 // pred_region
    _
  $region17: #{byol_forward.1} parent=0 // pred_fallthru
    _
  // Predicated region
  $region18: #{byol_forward.1} parent=0 // pred_check
    _
  $region19: #{byol_forward.1} parent=0 // pred_check_branch
    %20 = sbr.rel (0) target = $region21
  $region20: #{byol_forward.1} parent=0 // pred_region
    _
  $region21: #{byol_forward.1} parent=0 // pred_fallthru
    _
  // Predicated region
  $region22: #{byol_forward.1} parent=0 // pred_check
    _
  $region23: #{byol_forward.1} parent=0 // pred_check_branch
    %22 = sbr.rel (0) target = $region25
  $region24: #{byol_forward.1} parent=0 // pred_region
    _
  $region25: #{byol_forward.1} parent=0 // pred_fallthru
    _
  %v24 = vld [vmem:[%s2] sm:$0xf]
  %v25 = vld [vmem:[%s2 + $0x4] sm:$0xf]
  %v26 = vld [vmem:[%s2 + $0x8] sm:$0xf]
  %v27 = vld [vmem:[%s2 + $0xc] sm:$0xf]
  %v28 = vld [vmem:[%s2 + $0x10] sm:$0xf]
  %v29 = vld [vmem:[%s2 + $0x14] sm:$0xf]
  %v30 = vld [vmem:[%s2 + $0x18] sm:$0xf]
  %v31 = vld [vmem:[%s2 + $0x1c] sm:$0xf]
  %v32 = vld [vmem:[%s2 + $0x20] sm:$0xf]
  %v33 = vld [vmem:[%s2 + $0x24] sm:$0xf]
  %v34 = vld [vmem:[%s2 + $0x28] sm:$0xf]
  %v35 = vld [vmem:[%s2 + $0x2c] sm:$0xf]
  %v36 = vld [vmem:[%s2 + $0x30] sm:$0xf]
  %v37 = vld [vmem:[%s2 + $0x34] sm:$0xf]
  %v38 = vld [vmem:[%s2 + $0x38] sm:$0xf]
  %v39 = vld [vmem:[%s2 + $0x3c] sm:$0xf]
  %v40 = vld [vmem:[%s2 + $0x40] sm:$0xf]
  %v41 = vld [vmem:[%s2 + $0x44] sm:$0xf]
  %v42 = vld [vmem:[%s2 + $0x48] sm:$0xf]
  %v43 = vld [vmem:[%s2 + $0x4c] sm:$0xf]
  %v44 = vld [vmem:[%s2 + $0x50] sm:$0xf]
  %v45 = vld [vmem:[%s2 + $0x54] sm:$0xf]
  %v46 = vld [vmem:[%s2 + $0x58] sm:$0xf]
  %v47 = vld [vmem:[%s2 + $0x5c] sm:$0xf]
  %v48 = vld [vmem:[%s2 + $0x60] sm:$0xf]
  %v49 = vld [vmem:[%s2 + $0x64] sm:$0xf]
  %v50 = vld [vmem:[%s2 + $0x68] sm:$0xf]
  %v51 = vld [vmem:[%s2 + $0x6c] sm:$0xf]
  %v52 = vld [vmem:[%s2 + $0x70] sm:$0xf]
  %v53 = vld [vmem:[%s2 + $0x74] sm:$0xf]
  %v54 = vld [vmem:[%s2 + $0x78] sm:$0xf]
  %v55 = vld [vmem:[%s2 + $0x7c] sm:$0xf]
  %v56 = vld [vmem:[%s2 + $0x80] sm:$0xf]
  %v57 = vld [vmem:[%s2 + $0x84] sm:$0xf]
  %v58 = vld [vmem:[%s2 + $0x88] sm:$0xf]
  %v59 = vld [vmem:[%s2 + $0x8c] sm:$0xf]
  %v60 = vld [vmem:[%s2 + $0x90] sm:$0xf]
  %v61 = vld [vmem:[%s2 + $0x94] sm:$0xf]
  %v62 = vld [vmem:[%s2 + $0x98] sm:$0xf]
  %v63 = vld [vmem:[%s2 + $0x9c] sm:$0xf]
  %v64 = vld [vmem:[%s2 + $0xa0] sm:$0xf]
  %v65 = vld [vmem:[%s2 + $0xa4] sm:$0xf]
  %v66 = vld [vmem:[%s2 + $0xa8] sm:$0xf]
  %v67 = vld [vmem:[%s2 + $0xac] sm:$0xf]
  %v68 = vld [vmem:[%s2 + $0xb0] sm:$0xf]
  %v69 = vld [vmem:[%s2 + $0xb4] sm:$0xf]
  %v70 = vld [vmem:[%s2 + $0xb8] sm:$0xf]
  %v71 = vld [vmem:[%s2 + $0xbc] sm:$0xf]
  %v72 = vld [vmem:[%s2 + $0xc0] sm:$0xf]
  %v73 = vld [vmem:[%s2 + $0xc4] sm:$0xf]
  %v74 = vld [vmem:[%s2 + $0xc8] sm:$0xf]
  %v75 = vld [vmem:[%s2 + $0xcc] sm:$0xf]
  %v76 = vld [vmem:[%s2 + $0xd0] sm:$0xf]
  %v77 = vld [vmem:[%s2 + $0xd4] sm:$0xf]
  %v78 = vld [vmem:[%s2 + $0xd8] sm:$0xf]
  %v79 = vld [vmem:[%s2 + $0xdc] sm:$0xf]
  %v80 = vld [vmem:[%s2 + $0xe0] sm:$0xf]
  %v81 = vld [vmem:[%s2 + $0xe4] sm:$0xf]
  %v82 = vld [vmem:[%s2 + $0xe8] sm:$0xf]
  %v83 = vld [vmem:[%s2 + $0xec] sm:$0xf]
  %v84 = vld [vmem:[%s2 + $0xf0] sm:$0xf]
  %v85 = vld [vmem:[%s2 + $0xf4] sm:$0xf]
  %v86 = vld [vmem:[%s2 + $0xf8] sm:$0xf]
  %v87 = vld [vmem:[%s2 + $0xfc] sm:$0xf]
  %v88 = vld [vmem:[%s2 + $0x100] sm:$0xf]
  %v89 = vld [vmem:[%s2 + $0x104] sm:$0xf]
  %v90 = vld [vmem:[%s2 + $0x108] sm:$0xf]
  %v91 = vld [vmem:[%s2 + $0x10c] sm:$0xf]
  %v92 = vld [vmem:[%s2 + $0x110] sm:$0xf]
  %v93 = vld [vmem:[%s2 + $0x114] sm:$0xf]
  %v94 = vld [vmem:[%s2 + $0x118] sm:$0xf]
  %v95 = vld [vmem:[%s2 + $0x11c] sm:$0xf]
  %v96 = vld [vmem:[%s2 + $0x120] sm:$0xf]
  %v97 = vld [vmem:[%s2 + $0x124] sm:$0xf]
  %v98 = vld [vmem:[%s2 + $0x128] sm:$0xf]
  %v99 = vld [vmem:[%s2 + $0x12c] sm:$0xf]
  %v100 = vld [vmem:[%s2 + $0x130] sm:$0xf]
  %v101 = vld [vmem:[%s2 + $0x134] sm:$0xf]
  %v102 = vld [vmem:[%s2 + $0x138] sm:$0xf]
  %v103 = vld [vmem:[%s2 + $0x13c] sm:$0xf]
  %v104 = vld [vmem:[%s2 + $0x140] sm:$0xf]
  %v105 = vld [vmem:[%s2 + $0x144] sm:$0xf]
  %v106 = vld [vmem:[%s2 + $0x148] sm:$0xf]
  %v107 = vld [vmem:[%s2 + $0x14c] sm:$0xf]
  %v108 = vld [vmem:[%s2 + $0x150] sm:$0xf]
  %v109 = vld [vmem:[%s2 + $0x154] sm:$0xf]
  %v110 = vld [vmem:[%s2 + $0x158] sm:$0xf]
  %v111 = vld [vmem:[%s2 + $0x15c] sm:$0xf]
  %v112 = vld [vmem:[%s2 + $0x160] sm:$0xf]
  %v113 = vld [vmem:[%s2 + $0x164] sm:$0xf]
  %v114 = vld [vmem:[%s2 + $0x168] sm:$0xf]
  %v115 = vld [vmem:[%s2 + $0x16c] sm:$0xf]
  %v116 = vld [vmem:[%s2 + $0x170] sm:$0xf]
  %v117 = vld [vmem:[%s2 + $0x174] sm:$0xf]
  %v118 = vld [vmem:[%s2 + $0x178] sm:$0xf]
  %v119 = vld [vmem:[%s2 + $0x17c] sm:$0xf]
  %v120 = vld [vmem:[%s2 + $0x180] sm:$0xf]
  %v121 = vld [vmem:[%s2 + $0x184] sm:$0xf]
  %v122 = vld [vmem:[%s2 + $0x188] sm:$0xf]
  %v123 = vld [vmem:[%s2 + $0x18c] sm:$0xf]
  %v124 = vld [vmem:[%s2 + $0x190] sm:$0xf]
  %v125 = vld [vmem:[%s2 + $0x194] sm:$0xf]
  %v126 = vld [vmem:[%s2 + $0x198] sm:$0xf]
  %v127 = vld [vmem:[%s2 + $0x19c] sm:$0xf]
  %v128 = vld [vmem:[%s2 + $0x1a0] sm:$0xf]
  %v129 = vld [vmem:[%s2 + $0x1a4] sm:$0xf]
  %v130 = vld [vmem:[%s2 + $0x1a8] sm:$0xf]
  %v131 = vld [vmem:[%s2 + $0x1ac] sm:$0xf]
  %v132 = vld [vmem:[%s2 + $0x1b0] sm:$0xf]
  %v133 = vld [vmem:[%s2 + $0x1b4] sm:$0xf]
  %v134 = vld [vmem:[%s2 + $0x1b8] sm:$0xf]
  %v135 = vld [vmem:[%s2 + $0x1bc] sm:$0xf]
  %v136 = vld [vmem:[%s2 + $0x1c0] sm:$0xf]
  %v137 = vld [vmem:[%s2 + $0x1c4] sm:$0xf]
  %v138 = vld [vmem:[%s2 + $0x1c8] sm:$0xf]
  %v139 = vld [vmem:[%s2 + $0x1cc] sm:$0xf]
  %v140 = vld [vmem:[%s2 + $0x1d0] sm:$0xf]
  %v141 = vld [vmem:[%s2 + $0x1d4] sm:$0xf]
  %v142 = vld [vmem:[%s2 + $0x1d8] sm:$0xf]
  %v143 = vld [vmem:[%s2 + $0x1dc] sm:$0xf]
  %v144 = vld [vmem:[%s2 + $0x1e0] sm:$0xf]
  %v145 = vld [vmem:[%s2 + $0x1e4] sm:$0xf]
  %v146 = vld [vmem:[%s2 + $0x1e8] sm:$0xf]
  %v147 = vld [vmem:[%s2 + $0x1ec] sm:$0xf]
  %v148 = vld [vmem:[%s2 + $0x1f0] sm:$0xf]
  %v149 = vld [vmem:[%s2 + $0x1f4] sm:$0xf]
  %v150 = vld [vmem:[%s2 + $0x1f8] sm:$0xf]
  %v151 = vld [vmem:[%s2 + $0x1fc] sm:$0xf]
  %v152 = vld [vmem:[%s3] sm:$0x1]
  %v153 = vld [vmem:[%s4] sm:$0xff]
  %v154 = vld [vmem:[%s4 + $0x8] sm:$0xff]
  %v155 = vld [vmem:[%s4 + $0x10] sm:$0xff]
  %v156 = vld [vmem:[%s4 + $0x18] sm:$0xff]
  %v157 = vld [vmem:[%s5] sm:$0x3]
  %s158 = smul.u32 0, 2
  %v159 = vlaneseq
  %v160 = vshrl.u32 %v159, 7
  %v161 = vstv %s158
  %v162 = vadd.s32 %v161, %v160
  %vm163 = vcmp.lt.s32.totalorder %v162, 2
  %v164 = vld [vmem:[%s0] sm:$0xff]
  %v165 = vld [vmem:[%s0 + $0x8] sm:$0xff]
  %v168 = vcombine.high %v164, %v164
  %v170 = vunpack.c.l.s4 1983009808
  %v171 = vunpack.c.0.s8 %v170
  %v172 = vlaneseq
  %v173 = vshrl.u32 %v172, 7
  %v174 = vsub.s32 %v171, %v173
  %v175 = vrot.slane %v164, %v174
  %v177 = vunpack.c.l.s4 1983009808
  %v178 = vunpack.c.0.s8 %v177
  %v179 = vlaneseq
  %v180 = vshrl.u32 %v179, 7
  %v181 = vsub.s32 %v178, %v180
  %v182 = vrot.slane %v168, %v181
  %v183 = vcombine.high %v175, %v175
  %v184 = vcombine.high %v182, %v182
  %v185 = vcombine.high %v165, %v165
  %v187 = vunpack.c.l.s4 1983009808
  %v188 = vunpack.c.0.s8 %v187
  %v189 = vlaneseq
  %v190 = vshrl.u32 %v189, 7
  %v191 = vsub.s32 %v188, %v190
  %v192 = vrot.slane %v165, %v191
  %v194 = vunpack.c.l.s4 1983009808
  %v195 = vunpack.c.0.s8 %v194
  %v196 = vlaneseq
  %v197 = vshrl.u32 %v196, 7
  %v198 = vsub.s32 %v195, %v197
  %v199 = vrot.slane %v185, %v198
  %v200 = vcombine.high %v192, %v192
  %v201 = vcombine.high %v199, %v199
  %v210 = vpack.c.bf16 %v175, %v175
  %v211 = vpack.c.bf16 %v183, %v183
  %v212 = vpack.c.bf16 %v182, %v182
  %v213 = vpack.c.bf16 %v184, %v184
  %v214 = vpack.c.bf16 %v192, %v192
  %v215 = vpack.c.bf16 %v200, %v200
  %v216 = vpack.c.bf16 %v199, %v199
  %v217 = vpack.c.bf16 %v201, %v201
  %v219 = vlaneseq
  %v220 = vshrl.u32 %v219, 7
  %v221 = vsub.s32 0, %v220
  %v222 = vrot.slane %v152, %v221
  %v352 = vunpack.c.l.b16 %v24
  %v353 = vunpack.c.l.b16 %v25
  %v354 = vunpack.c.l.b16 %v26
  %v355 = vunpack.c.l.b16 %v27
  %v356 = vunpack.c.l.b16 %v28
  %v357 = vunpack.c.l.b16 %v29
  %v358 = vunpack.c.l.b16 %v30
  %v359 = vunpack.c.l.b16 %v31
  %v360 = vunpack.c.l.b16 %v32
  %v361 = vunpack.c.l.b16 %v33
  %v362 = vunpack.c.l.b16 %v34
  %v363 = vunpack.c.l.b16 %v35
  %v364 = vunpack.c.l.b16 %v36
  %v365 = vunpack.c.l.b16 %v37
  %v366 = vunpack.c.l.b16 %v38
  %v367 = vunpack.c.l.b16 %v39
  %v368 = vunpack.c.l.b16 %v40
  %v369 = vunpack.c.l.b16 %v41
  %v370 = vunpack.c.l.b16 %v42
  %v371 = vunpack.c.l.b16 %v43
  %v372 = vunpack.c.l.b16 %v44
  %v373 = vunpack.c.l.b16 %v45
  %v374 = vunpack.c.l.b16 %v46
  %v375 = vunpack.c.l.b16 %v47
  %v376 = vunpack.c.l.b16 %v48
  %v377 = vunpack.c.l.b16 %v49
  %v378 = vunpack.c.l.b16 %v50
  %v379 = vunpack.c.l.b16 %v51
  %v380 = vunpack.c.l.b16 %v52
  %v381 = vunpack.c.l.b16 %v53
  %v382 = vunpack.c.l.b16 %v54
  %v383 = vunpack.c.l.b16 %v55
  %v384 = vunpack.c.l.b16 %v56
  %v385 = vunpack.c.l.b16 %v57
  %v386 = vunpack.c.l.b16 %v58
  %v387 = vunpack.c.l.b16 %v59
  %v388 = vunpack.c.l.b16 %v60
  %v389 = vunpack.c.l.b16 %v61
  %v390 = vunpack.c.l.b16 %v62
  %v391 = vunpack.c.l.b16 %v63
  %v392 = vunpack.c.l.b16 %v64
  %v393 = vunpack.c.l.b16 %v65
  %v394 = vunpack.c.l.b16 %v66
  %v395 = vunpack.c.l.b16 %v67
  %v396 = vunpack.c.l.b16 %v68
  %v397 = vunpack.c.l.b16 %v69
  %v398 = vunpack.c.l.b16 %v70
  %v399 = vunpack.c.l.b16 %v71
  %v400 = vunpack.c.l.b16 %v72
  %v401 = vunpack.c.l.b16 %v73
  %v402 = vunpack.c.l.b16 %v74
  %v403 = vunpack.c.l.b16 %v75
  %v404 = vunpack.c.l.b16 %v76
  %v405 = vunpack.c.l.b16 %v77
  %v406 = vunpack.c.l.b16 %v78
  %v407 = vunpack.c.l.b16 %v79
  %v408 = vunpack.c.l.b16 %v80
  %v409 = vunpack.c.l.b16 %v81
  %v410 = vunpack.c.l.b16 %v82
  %v411 = vunpack.c.l.b16 %v83
  %v412 = vunpack.c.l.b16 %v84
  %v413 = vunpack.c.l.b16 %v85
  %v414 = vunpack.c.l.b16 %v86
  %v415 = vunpack.c.l.b16 %v87
  %v416 = vunpack.c.l.b16 %v88
  %v417 = vunpack.c.l.b16 %v89
  %v418 = vunpack.c.l.b16 %v90
  %v419 = vunpack.c.l.b16 %v91
  %v420 = vunpack.c.l.b16 %v92
  %v421 = vunpack.c.l.b16 %v93
  %v422 = vunpack.c.l.b16 %v94
  %v423 = vunpack.c.l.b16 %v95
  %v424 = vunpack.c.l.b16 %v96
  %v425 = vunpack.c.l.b16 %v97
  %v426 = vunpack.c.l.b16 %v98
  %v427 = vunpack.c.l.b16 %v99
  %v428 = vunpack.c.l.b16 %v100
  %v429 = vunpack.c.l.b16 %v101
  %v430 = vunpack.c.l.b16 %v102
  %v431 = vunpack.c.l.b16 %v103
  %v432 = vunpack.c.l.b16 %v104
  %v433 = vunpack.c.l.b16 %v105
  %v434 = vunpack.c.l.b16 %v106
  %v435 = vunpack.c.l.b16 %v107
  %v436 = vunpack.c.l.b16 %v108
  %v437 = vunpack.c.l.b16 %v109
  %v438 = vunpack.c.l.b16 %v110
  %v439 = vunpack.c.l.b16 %v111
  %v440 = vunpack.c.l.b16 %v112
  %v441 = vunpack.c.l.b16 %v113
  %v442 = vunpack.c.l.b16 %v114
  %v443 = vunpack.c.l.b16 %v115
  %v444 = vunpack.c.l.b16 %v116
  %v445 = vunpack.c.l.b16 %v117
  %v446 = vunpack.c.l.b16 %v118
  %v447 = vunpack.c.l.b16 %v119
  %v448 = vunpack.c.l.b16 %v120
  %v449 = vunpack.c.l.b16 %v121
  %v450 = vunpack.c.l.b16 %v122
  %v451 = vunpack.c.l.b16 %v123
  %v452 = vunpack.c.l.b16 %v124
  %v453 = vunpack.c.l.b16 %v125
  %v454 = vunpack.c.l.b16 %v126
  %v455 = vunpack.c.l.b16 %v127
  %v456 = vunpack.c.l.b16 %v128
  %v457 = vunpack.c.l.b16 %v129
  %v458 = vunpack.c.l.b16 %v130
  %v459 = vunpack.c.l.b16 %v131
  %v460 = vunpack.c.l.b16 %v132
  %v461 = vunpack.c.l.b16 %v133
  %v462 = vunpack.c.l.b16 %v134
  %v463 = vunpack.c.l.b16 %v135
  %v464 = vunpack.c.l.b16 %v136
  %v465 = vunpack.c.l.b16 %v137
  %v466 = vunpack.c.l.b16 %v138
  %v467 = vunpack.c.l.b16 %v139
  %v468 = vunpack.c.l.b16 %v140
  %v469 = vunpack.c.l.b16 %v141
  %v470 = vunpack.c.l.b16 %v142
  %v471 = vunpack.c.l.b16 %v143
  %v472 = vunpack.c.l.b16 %v144
  %v473 = vunpack.c.l.b16 %v145
  %v474 = vunpack.c.l.b16 %v146
  %v475 = vunpack.c.l.b16 %v147
  %v476 = vunpack.c.l.b16 %v148
  %v477 = vunpack.c.l.b16 %v149
  %v478 = vunpack.c.l.b16 %v150
  %v479 = vunpack.c.l.b16 %v151
  %v480 = vpack.c.b16 %v353, %v352
  %v481 = vpack.c.b16 %v355, %v354
  %v482 = vpack.c.b16 %v357, %v356
  %v483 = vpack.c.b16 %v359, %v358
  %v484 = vpack.c.b16 %v361, %v360
  %v485 = vpack.c.b16 %v363, %v362
  %v486 = vpack.c.b16 %v365, %v364
  %v487 = vpack.c.b16 %v367, %v366
  %v488 = vpack.c.b16 %v369, %v368
  %v489 = vpack.c.b16 %v371, %v370
  %v490 = vpack.c.b16 %v373, %v372
  %v491 = vpack.c.b16 %v375, %v374
  %v492 = vpack.c.b16 %v377, %v376
  %v493 = vpack.c.b16 %v379, %v378
  %v494 = vpack.c.b16 %v381, %v380
  %v495 = vpack.c.b16 %v383, %v382
  %v496 = vpack.c.b16 %v385, %v384
  %v497 = vpack.c.b16 %v387, %v386
  %v498 = vpack.c.b16 %v389, %v388
  %v499 = vpack.c.b16 %v391, %v390
  %v500 = vpack.c.b16 %v393, %v392
  %v501 = vpack.c.b16 %v395, %v394
  %v502 = vpack.c.b16 %v397, %v396
  %v503 = vpack.c.b16 %v399, %v398
  %v504 = vpack.c.b16 %v401, %v400
  %v505 = vpack.c.b16 %v403, %v402
  %v506 = vpack.c.b16 %v405, %v404
  %v507 = vpack.c.b16 %v407, %v406
  %v508 = vpack.c.b16 %v409, %v408
  %v509 = vpack.c.b16 %v411, %v410
  %v510 = vpack.c.b16 %v413, %v412
  %v511 = vpack.c.b16 %v415, %v414
  %v512 = vpack.c.b16 %v417, %v416
  %v513 = vpack.c.b16 %v419, %v418
  %v514 = vpack.c.b16 %v421, %v420
  %v515 = vpack.c.b16 %v423, %v422
  %v516 = vpack.c.b16 %v425, %v424
  %v517 = vpack.c.b16 %v427, %v426
  %v518 = vpack.c.b16 %v429, %v428
  %v519 = vpack.c.b16 %v431, %v430
  %v520 = vpack.c.b16 %v433, %v432
  %v521 = vpack.c.b16 %v435, %v434
  %v522 = vpack.c.b16 %v437, %v436
  %v523 = vpack.c.b16 %v439, %v438
  %v524 = vpack.c.b16 %v441, %v440
  %v525 = vpack.c.b16 %v443, %v442
  %v526 = vpack.c.b16 %v445, %v444
  %v527 = vpack.c.b16 %v447, %v446
  %v528 = vpack.c.b16 %v449, %v448
  %v529 = vpack.c.b16 %v451, %v450
  %v530 = vpack.c.b16 %v453, %v452
  %v531 = vpack.c.b16 %v455, %v454
  %v532 = vpack.c.b16 %v457, %v456
  %v533 = vpack.c.b16 %v459, %v458
  %v534 = vpack.c.b16 %v461, %v460
  %v535 = vpack.c.b16 %v463, %v462
  %v536 = vpack.c.b16 %v465, %v464
  %v537 = vpack.c.b16 %v467, %v466
  %v538 = vpack.c.b16 %v469, %v468
  %v539 = vpack.c.b16 %v471, %v470
  %v540 = vpack.c.b16 %v473, %v472
  %v541 = vpack.c.b16 %v475, %v474
  %v542 = vpack.c.b16 %v477, %v476
  %v543 = vpack.c.b16 %v479, %v478
  %608 = vmatprep.subr.bf16.mxu0 0
  %609 = vmatpush1.bf16.msra.mxu0 %v480
  %610 = vmatprep.subr.bf16.mxu0 0
  %611 = vmatpush1.bf16.msra.mxu0 %v481
  %612 = vmatprep.subr.bf16.mxu0 0
  %613 = vmatpush1.bf16.msra.mxu0 %v482
  %614 = vmatprep.subr.bf16.mxu0 0
  %615 = vmatpush1.bf16.msra.mxu0 %v483
  %616 = vmatprep.subr.bf16.mxu0 0
  %617 = vmatpush1.bf16.msra.mxu0 %v484
  %618 = vmatprep.subr.bf16.mxu0 0
  %619 = vmatpush1.bf16.msra.mxu0 %v485
  %620 = vmatprep.subr.bf16.mxu0 0
  %621 = vmatpush1.bf16.msra.mxu0 %v486
  %622 = vmatprep.subr.bf16.mxu0 0
  %623 = vmatpush1.bf16.msra.mxu0 %v487
  %624 = vmatprep.subr.bf16.mxu0 0
  %625 = vmatpush1.bf16.msra.mxu0 %v488
  %626 = vmatprep.subr.bf16.mxu0 0
  %627 = vmatpush1.bf16.msra.mxu0 %v489
  %628 = vmatprep.subr.bf16.mxu0 0
  %629 = vmatpush1.bf16.msra.mxu0 %v490
  %630 = vmatprep.subr.bf16.mxu0 0
  %631 = vmatpush1.bf16.msra.mxu0 %v491
  %632 = vmatprep.subr.bf16.mxu0 0
  %633 = vmatpush1.bf16.msra.mxu0 %v492
  %634 = vmatprep.subr.bf16.mxu0 0
  %635 = vmatpush1.bf16.msra.mxu0 %v493
  %636 = vmatprep.subr.bf16.mxu0 0
  %637 = vmatpush1.bf16.msra.mxu0 %v494
  %638 = vmatprep.subr.bf16.mxu0 0
  %639 = vmatpush1.bf16.msra.mxu0 %v495
  %640 = vmatprep.mubr.bf16.mxu0 %v211
  %641 = vmatmul.mubr.bf16.gmra.mrb[0].mxu0 %v210
  %v642 = vpop.f32.mrb[0].mxu0
  %v643 = vadd.f32 %v222, %v642
  %v644 = vpop.f32.mrb[0].mxu0
  %v645 = vpop.f32.mrb[0].mxu0
  %v646 = vpop.f32.mrb[0].mxu0
  %647 = vdwg.mxu0
  %648 = vmatprep.subr.bf16.mxu0 0
  %649 = vmatpush1.bf16.msra.mxu0 %v496
  %650 = vmatprep.subr.bf16.mxu0 0
  %651 = vmatpush1.bf16.msra.mxu0 %v497
  %652 = vmatprep.subr.bf16.mxu0 0
  %653 = vmatpush1.bf16.msra.mxu0 %v498
  %654 = vmatprep.subr.bf16.mxu0 0
  %655 = vmatpush1.bf16.msra.mxu0 %v499
  %656 = vmatprep.subr.bf16.mxu0 0
  %657 = vmatpush1.bf16.msra.mxu0 %v500
  %658 = vmatprep.subr.bf16.mxu0 0
  %659 = vmatpush1.bf16.msra.mxu0 %v501
  %660 = vmatprep.subr.bf16.mxu0 0
  %661 = vmatpush1.bf16.msra.mxu0 %v502
  %662 = vmatprep.subr.bf16.mxu0 0
  %663 = vmatpush1.bf16.msra.mxu0 %v503
  %664 = vmatprep.subr.bf16.mxu0 0
  %665 = vmatpush1.bf16.msra.mxu0 %v504
  %666 = vmatprep.subr.bf16.mxu0 0
  %667 = vmatpush1.bf16.msra.mxu0 %v505
  %668 = vmatprep.subr.bf16.mxu0 0
  %669 = vmatpush1.bf16.msra.mxu0 %v506
  %670 = vmatprep.subr.bf16.mxu0 0
  %671 = vmatpush1.bf16.msra.mxu0 %v507
  %672 = vmatprep.subr.bf16.mxu0 0
  %673 = vmatpush1.bf16.msra.mxu0 %v508
  %674 = vmatprep.subr.bf16.mxu0 0
  %675 = vmatpush1.bf16.msra.mxu0 %v509
  %676 = vmatprep.subr.bf16.mxu0 0
  %677 = vmatpush1.bf16.msra.mxu0 %v510
  %678 = vmatprep.subr.bf16.mxu0 0
  %679 = vmatpush1.bf16.msra.mxu0 %v511
  %680 = vmatprep.mubr.bf16.mxu0 %v213
  %681 = vmatmul.mubr.bf16.gmra.mrb[0].mxu0 %v212
  %v682 = vpop.f32.mrb[0].mxu0
  %v683 = vadd.f32 %v643, %v682
  %v684 = vpop.f32.mrb[0].mxu0
  %v685 = vpop.f32.mrb[0].mxu0
  %v686 = vpop.f32.mrb[0].mxu0
  %687 = vdwg.mxu0
  %688 = vmatprep.subr.bf16.mxu0 0
  %689 = vmatpush1.bf16.msra.mxu0 %v512
  %690 = vmatprep.subr.bf16.mxu0 0
  %691 = vmatpush1.bf16.msra.mxu0 %v513
  %692 = vmatprep.subr.bf16.mxu0 0
  %693 = vmatpush1.bf16.msra.mxu0 %v514
  %694 = vmatprep.subr.bf16.mxu0 0
  %695 = vmatpush1.bf16.msra.mxu0 %v515
  %696 = vmatprep.subr.bf16.mxu0 0
  %697 = vmatpush1.bf16.msra.mxu0 %v516
  %698 = vmatprep.subr.bf16.mxu0 0
  %699 = vmatpush1.bf16.msra.mxu0 %v517
  %700 = vmatprep.subr.bf16.mxu0 0
  %701 = vmatpush1.bf16.msra.mxu0 %v518
  %702 = vmatprep.subr.bf16.mxu0 0
  %703 = vmatpush1.bf16.msra.mxu0 %v519
  %704 = vmatprep.subr.bf16.mxu0 0
  %705 = vmatpush1.bf16.msra.mxu0 %v520
  %706 = vmatprep.subr.bf16.mxu0 0
  %707 = vmatpush1.bf16.msra.mxu0 %v521
  %708 = vmatprep.subr.bf16.mxu0 0
  %709 = vmatpush1.bf16.msra.mxu0 %v522
  %710 = vmatprep.subr.bf16.mxu0 0
  %711 = vmatpush1.bf16.msra.mxu0 %v523
  %712 = vmatprep.subr.bf16.mxu0 0
  %713 = vmatpush1.bf16.msra.mxu0 %v524
  %714 = vmatprep.subr.bf16.mxu0 0
  %715 = vmatpush1.bf16.msra.mxu0 %v525
  %716 = vmatprep.subr.bf16.mxu0 0
  %717 = vmatpush1.bf16.msra.mxu0 %v526
  %718 = vmatprep.subr.bf16.mxu0 0
  %719 = vmatpush1.bf16.msra.mxu0 %v527
  %720 = vmatprep.mubr.bf16.mxu0 %v215
  %721 = vmatmul.mubr.bf16.gmra.mrb[0].mxu0 %v214
  %v722 = vpop.f32.mrb[0].mxu0
  %v723 = vadd.f32 %v683, %v722
  %v724 = vpop.f32.mrb[0].mxu0
  %v725 = vpop.f32.mrb[0].mxu0
  %v726 = vpop.f32.mrb[0].mxu0
  %727 = vdwg.mxu0
  %728 = vmatprep.subr.bf16.mxu0 0
  %729 = vmatpush1.bf16.msra.mxu0 %v528
  %730 = vmatprep.subr.bf16.mxu0 0
  %731 = vmatpush1.bf16.msra.mxu0 %v529
  %732 = vmatprep.subr.bf16.mxu0 0
  %733 = vmatpush1.bf16.msra.mxu0 %v530
  %734 = vmatprep.subr.bf16.mxu0 0
  %735 = vmatpush1.bf16.msra.mxu0 %v531
  %736 = vmatprep.subr.bf16.mxu0 0
  %737 = vmatpush1.bf16.msra.mxu0 %v532
  %738 = vmatprep.subr.bf16.mxu0 0
  %739 = vmatpush1.bf16.msra.mxu0 %v533
  %740 = vmatprep.subr.bf16.mxu0 0
  %741 = vmatpush1.bf16.msra.mxu0 %v534
  %742 = vmatprep.subr.bf16.mxu0 0
  %743 = vmatpush1.bf16.msra.mxu0 %v535
  %744 = vmatprep.subr.bf16.mxu0 0
  %745 = vmatpush1.bf16.msra.mxu0 %v536
  %746 = vmatprep.subr.bf16.mxu0 0
  %747 = vmatpush1.bf16.msra.mxu0 %v537
  %748 = vmatprep.subr.bf16.mxu0 0
  %749 = vmatpush1.bf16.msra.mxu0 %v538
  %750 = vmatprep.subr.bf16.mxu0 0
  %751 = vmatpush1.bf16.msra.mxu0 %v539
  %752 = vmatprep.subr.bf16.mxu0 0
  %753 = vmatpush1.bf16.msra.mxu0 %v540
  %754 = vmatprep.subr.bf16.mxu0 0
  %755 = vmatpush1.bf16.msra.mxu0 %v541
  %756 = vmatprep.subr.bf16.mxu0 0
  %757 = vmatpush1.bf16.msra.mxu0 %v542
  %758 = vmatprep.subr.bf16.mxu0 0
  %759 = vmatpush1.bf16.msra.mxu0 %v543
  %760 = vmatprep.mubr.bf16.mxu0 %v217
  %761 = vmatmul.mubr.bf16.gmra.mrb[0].mxu0 %v216
  %v762 = vpop.f32.mrb[0].mxu0
  %v763 = vadd.f32 %v723, %v762
  %v764 = vpop.f32.mrb[0].mxu0
  %v765 = vpop.f32.mrb[0].mxu0
  %v766 = vpop.f32.mrb[0].mxu0
  %767 = vdwg.mxu0
  %v768 = vmax.f32 %v763, 0.0
  %v769 = vpack.c.bf16 %v768, %v768
  %v771 = vlaneseq
  %v772 = vshrl.u32 %v771, 7
  %v773 = vsub.s32 0, %v772
  %v774 = vrot.slane %v157, %v773
  %v775 = vlaneseq
  %v776 = vshrl.u32 %v775, 7
  %v777 = vsub.s32 1, %v776
  %v778 = vrot.slane %v157, %v777
  %v785 = vunpack.c.l.b16 %v153
  %v786 = vunpack.c.h.b16 %v153
  %v787 = vunpack.c.l.b16 %v154
  %v788 = vunpack.c.h.b16 %v154
  %v789 = vunpack.c.l.b16 %v155
  %v790 = vunpack.c.h.b16 %v155
  %v791 = vunpack.c.l.b16 %v156
  %v792 = vunpack.c.h.b16 %v156
  %v793 = vpack.c.b16 %v787, %v785
  %v794 = vpack.c.b16 %v788, %v786
  %v795 = vpack.c.b16 %v791, %v789
  %v796 = vpack.c.b16 %v792, %v790
  %vm801 = vcmask 261120
  %v803 = vsel %vm801, %v769, 0
  %805 = vmatprep.subr.bf16.mxu0 %v794
  %806 = vmatpush1.bf16.msra.mxu0 %v793
  %807 = vmatprep.subr.bf16.mxu0 %v796
  %808 = vmatpush1.bf16.msra.mxu0 %v795
  %809 = vmatprep.subr.bf16.mxu0 0
  %810 = vmatpush1.bf16.msra.mxu0 0
  %811 = vmatprep.subr.bf16.mxu0 0
  %812 = vmatpush1.bf16.msra.mxu0 0
  %813 = vmatprep.subr.bf16.mxu0 0
  %814 = vmatpush1.bf16.msra.mxu0 0
  %815 = vmatprep.subr.bf16.mxu0 0
  %816 = vmatpush1.bf16.msra.mxu0 0
  %817 = vmatprep.subr.bf16.mxu0 0
  %818 = vmatpush1.bf16.msra.mxu0 0
  %819 = vmatprep.subr.bf16.mxu0 0
  %820 = vmatpush1.bf16.msra.mxu0 0
  %821 = vmatprep.subr.bf16.mxu0 0
  %822 = vmatpush1.bf16.msra.mxu0 0
  %823 = vmatprep.subr.bf16.mxu0 0
  %824 = vmatpush1.bf16.msra.mxu0 0
  %825 = vmatprep.subr.bf16.mxu0 0
  %826 = vmatpush1.bf16.msra.mxu0 0
  %827 = vmatprep.subr.bf16.mxu0 0
  %828 = vmatpush1.bf16.msra.mxu0 0
  %829 = vmatprep.subr.bf16.mxu0 0
  %830 = vmatpush1.bf16.msra.mxu0 0
  %831 = vmatprep.subr.bf16.mxu0 0
  %832 = vmatpush1.bf16.msra.mxu0 0
  %833 = vmatprep.subr.bf16.mxu0 0
  %834 = vmatpush1.bf16.msra.mxu0 0
  %835 = vmatprep.subr.bf16.mxu0 0
  %836 = vmatpush1.bf16.msra.mxu0 0
  %837 = vmatprep.mubr.bf16.mxu0 0
  %838 = vmatmul.mubr.bf16.gmra.mrb[0].mxu0 %v803
  %v839 = vpop.f32.mrb[0].mxu0
  %v840 = vadd.f32 %v774, %v839
  %v841 = vpop.f32.mrb[0].mxu0
  %v842 = vadd.f32 %v778, %v841
  %v843 = vpop.f32.mrb[0].mxu0
  %v844 = vpop.f32.mrb[0].mxu0
  %845 = vdwg.mxu0
  %v846 = vmul.f32 %v842, %v842
  %vm847 = vcmask 1041408
  %v848 = vsel %vm847, %v846, 0.0
  %849 = vadd.xlane.f32.xlu0 %v848
  %v850 = vpop.xlane.xlu0 %849
  %v851 = vmul.f32 %v840, %v840
  %v852 = vsel %vm847, %v851, 0.0
  %853 = vadd.xlane.f32.xlu0 %v852
  %v854 = vpop.xlane.xlu0 %853
  %v855 = vmul.f32 %v842, %v840
  %v856 = vsel %vm847, %v855, 0.0
  %857 = vadd.xlane.f32.xlu0 %v856
  %v858 = vpop.xlane.xlu0 %857
  %v859 = vrsqrt.pop %v850
  %v860 = vmin.f32 %v859, 1e+12
  %v861 = vrsqrt.pop %v854
  %v862 = vmin.f32 %v861, 1e+12
  %v863 = vmul.f32 %v858, %v860
  %v864 = vmul.f32 %v863, %v862
  %v865 = vmul.f32 %v864, 2.0
  %v866 = vsub.f32 2.0, %v865
  %v867 = vsel %vm163, %v866, 0.0
  %v868 = vld [vmem:[%s1] sm:$0xff]
  %v869 = vld [vmem:[%s1 + $0x8] sm:$0xff]
  %v872 = vcombine.high %v868, %v868
  %v874 = vunpack.c.l.s4 1983009808
  %v875 = vunpack.c.0.s8 %v874
  %v876 = vlaneseq
  %v877 = vshrl.u32 %v876, 7
  %v878 = vsub.s32 %v875, %v877
  %v879 = vrot.slane %v868, %v878
  %v881 = vunpack.c.l.s4 1983009808
  %v882 = vunpack.c.0.s8 %v881
  %v883 = vlaneseq
  %v884 = vshrl.u32 %v883, 7
  %v885 = vsub.s32 %v882, %v884
  %v886 = vrot.slane %v872, %v885
  %v887 = vcombine.high %v879, %v879
  %v888 = vcombine.high %v886, %v886
  %v889 = vcombine.high %v869, %v869
  %v891 = vunpack.c.l.s4 1983009808
  %v892 = vunpack.c.0.s8 %v891
  %v893 = vlaneseq
  %v894 = vshrl.u32 %v893, 7
  %v895 = vsub.s32 %v892, %v894
  %v896 = vrot.slane %v869, %v895
  %v898 = vunpack.c.l.s4 1983009808
  %v899 = vunpack.c.0.s8 %v898
  %v900 = vlaneseq
  %v901 = vshrl.u32 %v900, 7
  %v902 = vsub.s32 %v899, %v901
  %v903 = vrot.slane %v889, %v902
  %v904 = vcombine.high %v896, %v896
  %v905 = vcombine.high %v903, %v903
  %v914 = vpack.c.bf16 %v879, %v879
  %v915 = vpack.c.bf16 %v887, %v887
  %v916 = vpack.c.bf16 %v886, %v886
  %v917 = vpack.c.bf16 %v888, %v888
  %v918 = vpack.c.bf16 %v896, %v896
  %v919 = vpack.c.bf16 %v904, %v904
  %v920 = vpack.c.bf16 %v903, %v903
  %v921 = vpack.c.bf16 %v905, %v905
  %922 = vmatprep.subr.bf16.mxu0 0
  %923 = vmatpush1.bf16.msra.mxu0 %v480
  %924 = vmatprep.subr.bf16.mxu0 0
  %925 = vmatpush1.bf16.msra.mxu0 %v481
  %926 = vmatprep.subr.bf16.mxu0 0
  %927 = vmatpush1.bf16.msra.mxu0 %v482
  %928 = vmatprep.subr.bf16.mxu0 0
  %929 = vmatpush1.bf16.msra.mxu0 %v483
  %930 = vmatprep.subr.bf16.mxu0 0
  %931 = vmatpush1.bf16.msra.mxu0 %v484
  %932 = vmatprep.subr.bf16.mxu0 0
  %933 = vmatpush1.bf16.msra.mxu0 %v485
  %934 = vmatprep.subr.bf16.mxu0 0
  %935 = vmatpush1.bf16.msra.mxu0 %v486
  %936 = vmatprep.subr.bf16.mxu0 0
  %937 = vmatpush1.bf16.msra.mxu0 %v487
  %938 = vmatprep.subr.bf16.mxu0 0
  %939 = vmatpush1.bf16.msra.mxu0 %v488
  %940 = vmatprep.subr.bf16.mxu0 0
  %941 = vmatpush1.bf16.msra.mxu0 %v489
  %942 = vmatprep.subr.bf16.mxu0 0
  %943 = vmatpush1.bf16.msra.mxu0 %v490
  %944 = vmatprep.subr.bf16.mxu0 0
  %945 = vmatpush1.bf16.msra.mxu0 %v491
  %946 = vmatprep.subr.bf16.mxu0 0
  %947 = vmatpush1.bf16.msra.mxu0 %v492
  %948 = vmatprep.subr.bf16.mxu0 0
  %949 = vmatpush1.bf16.msra.mxu0 %v493
  %950 = vmatprep.subr.bf16.mxu0 0
  %951 = vmatpush1.bf16.msra.mxu0 %v494
  %952 = vmatprep.subr.bf16.mxu0 0
  %953 = vmatpush1.bf16.msra.mxu0 %v495
  %954 = vmatprep.mubr.bf16.mxu0 %v915
  %955 = vmatmul.mubr.bf16.gmra.mrb[0].mxu0 %v914
  %v956 = vpop.f32.mrb[0].mxu0
  %v957 = vadd.f32 %v222, %v956
  %v958 = vpop.f32.mrb[0].mxu0
  %v959 = vpop.f32.mrb[0].mxu0
  %v960 = vpop.f32.mrb[0].mxu0
  %961 = vdwg.mxu0
  %962 = vmatprep.subr.bf16.mxu0 0
  %963 = vmatpush1.bf16.msra.mxu0 %v496
  %964 = vmatprep.subr.bf16.mxu0 0
  %965 = vmatpush1.bf16.msra.mxu0 %v497
  %966 = vmatprep.subr.bf16.mxu0 0
  %967 = vmatpush1.bf16.msra.mxu0 %v498
  %968 = vmatprep.subr.bf16.mxu0 0
  %969 = vmatpush1.bf16.msra.mxu0 %v499
  %970 = vmatprep.subr.bf16.mxu0 0
  %971 = vmatpush1.bf16.msra.mxu0 %v500
  %972 = vmatprep.subr.bf16.mxu0 0
  %973 = vmatpush1.bf16.msra.mxu0 %v501
  %974 = vmatprep.subr.bf16.mxu0 0
  %975 = vmatpush1.bf16.msra.mxu0 %v502
  %976 = vmatprep.subr.bf16.mxu0 0
  %977 = vmatpush1.bf16.msra.mxu0 %v503
  %978 = vmatprep.subr.bf16.mxu0 0
  %979 = vmatpush1.bf16.msra.mxu0 %v504
  %980 = vmatprep.subr.bf16.mxu0 0
  %981 = vmatpush1.bf16.msra.mxu0 %v505
  %982 = vmatprep.subr.bf16.mxu0 0
  %983 = vmatpush1.bf16.msra.mxu0 %v506
  %984 = vmatprep.subr.bf16.mxu0 0
  %985 = vmatpush1.bf16.msra.mxu0 %v507
  %986 = vmatprep.subr.bf16.mxu0 0
  %987 = vmatpush1.bf16.msra.mxu0 %v508
  %988 = vmatprep.subr.bf16.mxu0 0
  %989 = vmatpush1.bf16.msra.mxu0 %v509
  %990 = vmatprep.subr.bf16.mxu0 0
  %991 = vmatpush1.bf16.msra.mxu0 %v510
  %992 = vmatprep.subr.bf16.mxu0 0
  %993 = vmatpush1.bf16.msra.mxu0 %v511
  %994 = vmatprep.mubr.bf16.mxu0 %v917
  %995 = vmatmul.mubr.bf16.gmra.mrb[0].mxu0 %v916
  %v996 = vpop.f32.mrb[0].mxu0
  %v997 = vadd.f32 %v957, %v996
  %v998 = vpop.f32.mrb[0].mxu0
  %v999 = vpop.f32.mrb[0].mxu0
  %v1000 = vpop.f32.mrb[0].mxu0
  %1001 = vdwg.mxu0
  %1002 = vmatprep.subr.bf16.mxu0 0
  %1003 = vmatpush1.bf16.msra.mxu0 %v512
  %1004 = vmatprep.subr.bf16.mxu0 0
  %1005 = vmatpush1.bf16.msra.mxu0 %v513
  %1006 = vmatprep.subr.bf16.mxu0 0
  %1007 = vmatpush1.bf16.msra.mxu0 %v514
  %1008 = vmatprep.subr.bf16.mxu0 0
  %1009 = vmatpush1.bf16.msra.mxu0 %v515
  %1010 = vmatprep.subr.bf16.mxu0 0
  %1011 = vmatpush1.bf16.msra.mxu0 %v516
  %1012 = vmatprep.subr.bf16.mxu0 0
  %1013 = vmatpush1.bf16.msra.mxu0 %v517
  %1014 = vmatprep.subr.bf16.mxu0 0
  %1015 = vmatpush1.bf16.msra.mxu0 %v518
  %1016 = vmatprep.subr.bf16.mxu0 0
  %1017 = vmatpush1.bf16.msra.mxu0 %v519
  %1018 = vmatprep.subr.bf16.mxu0 0
  %1019 = vmatpush1.bf16.msra.mxu0 %v520
  %1020 = vmatprep.subr.bf16.mxu0 0
  %1021 = vmatpush1.bf16.msra.mxu0 %v521
  %1022 = vmatprep.subr.bf16.mxu0 0
  %1023 = vmatpush1.bf16.msra.mxu0 %v522
  %1024 = vmatprep.subr.bf16.mxu0 0
  %1025 = vmatpush1.bf16.msra.mxu0 %v523
  %1026 = vmatprep.subr.bf16.mxu0 0
  %1027 = vmatpush1.bf16.msra.mxu0 %v524
  %1028 = vmatprep.subr.bf16.mxu0 0
  %1029 = vmatpush1.bf16.msra.mxu0 %v525
  %1030 = vmatprep.subr.bf16.mxu0 0
  %1031 = vmatpush1.bf16.msra.mxu0 %v526
  %1032 = vmatprep.subr.bf16.mxu0 0
  %1033 = vmatpush1.bf16.msra.mxu0 %v527
  %1034 = vmatprep.mubr.bf16.mxu0 %v919
  %1035 = vmatmul.mubr.bf16.gmra.mrb[0].mxu0 %v918
  %v1036 = vpop.f32.mrb[0].mxu0
  %v1037 = vadd.f32 %v997, %v1036
  %v1038 = vpop.f32.mrb[0].mxu0
  %v1039 = vpop.f32.mrb[0].mxu0
  %v1040 = vpop.f32.mrb[0].mxu0
  %1041 = vdwg.mxu0
  %1042 = vmatprep.subr.bf16.mxu0 0
  %1043 = vmatpush1.bf16.msra.mxu0 %v528
  %1044 = vmatprep.subr.bf16.mxu0 0
  %1045 = vmatpush1.bf16.msra.mxu0 %v529
  %1046 = vmatprep.subr.bf16.mxu0 0
  %1047 = vmatpush1.bf16.msra.mxu0 %v530
  %1048 = vmatprep.subr.bf16.mxu0 0
  %1049 = vmatpush1.bf16.msra.mxu0 %v531
  %1050 = vmatprep.subr.bf16.mxu0 0
  %1051 = vmatpush1.bf16.msra.mxu0 %v532
  %1052 = vmatprep.subr.bf16.mxu0 0
  %1053 = vmatpush1.bf16.msra.mxu0 %v533
  %1054 = vmatprep.subr.bf16.mxu0 0
  %1055 = vmatpush1.bf16.msra.mxu0 %v534
  %1056 = vmatprep.subr.bf16.mxu0 0
  %1057 = vmatpush1.bf16.msra.mxu0 %v535
  %1058 = vmatprep.subr.bf16.mxu0 0
  %1059 = vmatpush1.bf16.msra.mxu0 %v536
  %1060 = vmatprep.subr.bf16.mxu0 0
  %1061 = vmatpush1.bf16.msra.mxu0 %v537
  %1062 = vmatprep.subr.bf16.mxu0 0
  %1063 = vmatpush1.bf16.msra.mxu0 %v538
  %1064 = vmatprep.subr.bf16.mxu0 0
  %1065 = vmatpush1.bf16.msra.mxu0 %v539
  %1066 = vmatprep.subr.bf16.mxu0 0
  %1067 = vmatpush1.bf16.msra.mxu0 %v540
  %1068 = vmatprep.subr.bf16.mxu0 0
  %1069 = vmatpush1.bf16.msra.mxu0 %v541
  %1070 = vmatprep.subr.bf16.mxu0 0
  %1071 = vmatpush1.bf16.msra.mxu0 %v542
  %1072 = vmatprep.subr.bf16.mxu0 0
  %1073 = vmatpush1.bf16.msra.mxu0 %v543
  %1074 = vmatprep.mubr.bf16.mxu0 %v921
  %1075 = vmatmul.mubr.bf16.gmra.mrb[0].mxu0 %v920
  %v1076 = vpop.f32.mrb[0].mxu0
  %v1077 = vadd.f32 %v1037, %v1076
  %v1078 = vpop.f32.mrb[0].mxu0
  %v1079 = vpop.f32.mrb[0].mxu0
  %v1080 = vpop.f32.mrb[0].mxu0
  %1081 = vdwg.mxu0
  %v1082 = vmax.f32 %v1077, 0.0
  %v1083 = vpack.c.bf16 %v1082, %v1082
  %v1085 = vsel %vm801, %v1083, 0
  %1087 = vmatprep.subr.bf16.mxu0 %v794
  %1088 = vmatpush1.bf16.msra.mxu0 %v793
  %1089 = vmatprep.subr.bf16.mxu0 %v796
  %1090 = vmatpush1.bf16.msra.mxu0 %v795
  %1091 = vmatprep.subr.bf16.mxu0 0
  %1092 = vmatpush1.bf16.msra.mxu0 0
  %1093 = vmatprep.subr.bf16.mxu0 0
  %1094 = vmatpush1.bf16.msra.mxu0 0
  %1095 = vmatprep.subr.bf16.mxu0 0
  %1096 = vmatpush1.bf16.msra.mxu0 0
  %1097 = vmatprep.subr.bf16.mxu0 0
  %1098 = vmatpush1.bf16.msra.mxu0 0
  %1099 = vmatprep.subr.bf16.mxu0 0
  %1100 = vmatpush1.bf16.msra.mxu0 0
  %1101 = vmatprep.subr.bf16.mxu0 0
  %1102 = vmatpush1.bf16.msra.mxu0 0
  %1103 = vmatprep.subr.bf16.mxu0 0
  %1104 = vmatpush1.bf16.msra.mxu0 0
  %1105 = vmatprep.subr.bf16.mxu0 0
  %1106 = vmatpush1.bf16.msra.mxu0 0
  %1107 = vmatprep.subr.bf16.mxu0 0
  %1108 = vmatpush1.bf16.msra.mxu0 0
  %1109 = vmatprep.subr.bf16.mxu0 0
  %1110 = vmatpush1.bf16.msra.mxu0 0
  %1111 = vmatprep.subr.bf16.mxu0 0
  %1112 = vmatpush1.bf16.msra.mxu0 0
  %1113 = vmatprep.subr.bf16.mxu0 0
  %1114 = vmatpush1.bf16.msra.mxu0 0
  %1115 = vmatprep.subr.bf16.mxu0 0
  %1116 = vmatpush1.bf16.msra.mxu0 0
  %1117 = vmatprep.subr.bf16.mxu0 0
  %1118 = vmatpush1.bf16.msra.mxu0 0
  %1119 = vmatprep.mubr.bf16.mxu0 0
  %1120 = vmatmul.mubr.bf16.gmra.mrb[0].mxu0 %v1085
  %v1121 = vpop.f32.mrb[0].mxu0
  %v1122 = vadd.f32 %v774, %v1121
  %v1123 = vpop.f32.mrb[0].mxu0
  %v1124 = vadd.f32 %v778, %v1123
  %v1125 = vpop.f32.mrb[0].mxu0
  %v1126 = vpop.f32.mrb[0].mxu0
  %1127 = vdwg.mxu0
  %v1128 = vmul.f32 %v1124, %v1124
  %v1129 = vsel %vm847, %v1128, 0.0
  %1130 = vadd.xlane.f32.xlu0 %v1129
  %v1131 = vpop.xlane.xlu0 %1130
  %v1132 = vmul.f32 %v1122, %v1122
  %v1133 = vsel %vm847, %v1132, 0.0
  %1134 = vadd.xlane.f32.xlu0 %v1133
  %v1135 = vpop.xlane.xlu0 %1134
  %v1136 = vmul.f32 %v1124, %v1122
  %v1137 = vsel %vm847, %v1136, 0.0
  %1138 = vadd.xlane.f32.xlu0 %v1137
  %v1139 = vpop.xlane.xlu0 %1138
  %v1140 = vrsqrt.pop %v1131
  %v1141 = vmin.f32 %v1140, 1e+12
  %v1142 = vrsqrt.pop %v1135
  %v1143 = vmin.f32 %v1142, 1e+12
  %v1144 = vmul.f32 %v1139, %v1141
  %v1145 = vmul.f32 %v1144, %v1143
  %v1146 = vmul.f32 %v1145, 2.0
  %v1147 = vsub.f32 2.0, %v1146
  %v1148 = vsel %vm163, %v1147, 0.0
  %v1149 = vsel %vm847, %v867, 0.0
  %v1150 = vrot.slane %v1149, 4
  %v1151 = vadd.f32 %v1149, %v1150
  %v1152 = vrot.slane %v1151, 2
  %v1153 = vadd.f32 %v1151, %v1152
  %v1154 = vrot.slane %v1153, 1
  %v1155 = vadd.f32 %v1153, %v1154
  %v1156 = vsel %vm847, %v1148, 0.0
  %v1157 = vrot.slane %v1156, 4
  %v1158 = vadd.f32 %v1156, %v1157
  %v1159 = vrot.slane %v1158, 2
  %v1160 = vadd.f32 %v1158, %v1159
  %v1161 = vrot.slane %v1160, 1
  %v1162 = vadd.f32 %v1160, %v1161
  %v1163 = vlaneseq
  %v1164 = vand.u32 %v1163, 127
  %vm1165 = vcmp.eq.s32.totalorder %v160, 0
  %vm1166 = vcmp.eq.s32.totalorder %v1164, 0
  %vm1167 = vmand %vm1165, %vm1166
  %vm1168 = vcmp.eq.s32.totalorder %v160, 1
  %vm1169 = vmand %vm1168, %vm1166
  %v1170 = vsel %vm1169, %v1162, 0.0
  %v1171 = vsel %vm1167, %v1155, %v1170
  %1172 = vst [vmem:[%s6] sm:$0xff] %v1171
  // Predicated region
  $region26: #{byol_forward.1} parent=0 // pred_check
    _
  $region27: #{byol_forward.1} parent=0 // pred_check_branch
    %1174 = sbr.rel (0) target = $region29
  $region28: #{byol_forward.1} parent=0 // pred_region
    _
  $region29: #{byol_forward.1} parent=0 // pred_fallthru
    _
  // Predicated region
  $region30: #{byol_forward.1} parent=0 // pred_check
    _
  $region31: #{byol_forward.1} parent=0 // pred_check_branch
    %1176 = sbr.rel (0) target = $region33
  $region32: #{byol_forward.1} parent=0 // pred_region
    _
  $region33: #{byol_forward.1} parent=0 // pred_fallthru
    _

</llo_original>
